<compile_context>
chip_gen: v7x
topology: tpu7x:2x2x1
jax: 0.10.0
libtpu: 0.0.40
codegen_flags: <defaults>
</compile_context>

<pallas_src>
import functools

import jax
import jax.numpy as jnp
from jax.experimental import pallas as pl
from jax.experimental.pallas import tpu as pltpu


LANE = 128        # lane width: feature dims padded to multiples of this
TILE_ROWS = 256   # node-row tile of A_hat processed per grid step


def _round_up(x, m):
    return (x + m - 1) // m * m


def _vmem_capacity_bytes():
    try:
        return int(pltpu.get_tpu_info().vmem_capacity_bytes)
    except Exception:
        return 64 * 1024 * 1024  # conservative (v7x-sized) fallback


# ---------------------------------------------------------------------------
# Fused kernel: all GCN layers in one pallas_call
# ---------------------------------------------------------------------------
def fused_gcn_kernel(xw0_hbm, a_ref, w_ref, b_ref, o_ref,
                     xw_even, xw_odd, seed_sem,
                     *, tile_rows, num_layers, a_resident):
    l = pl.program_id(0)                      # layer index (outer, sequential)
    i = pl.program_id(1)                      # node-row tile index (inner)
    row0 = pl.multiple_of(i * tile_rows, tile_rows)
    is_last = l == num_layers - 1

    # one-time seed: XW_0 = X @ W_0 (precomputed in XLA, lives in HBM) is
    # DMA'd once into the "even" ping-pong buffer
    @pl.when(jnp.logical_and(l == 0, i == 0))
    def _():
        cp = pltpu.make_async_copy(xw0_hbm, xw_even, seed_sem)
        cp.start()
        cp.wait()

    # rows of A_hat for this tile: slice of the VMEM-resident block, or the
    # streamed (tile_rows, n_pad) tile
    if a_resident:
        a_rows = a_ref[pl.ds(row0, tile_rows), :]
    else:
        a_rows = a_ref[...]

    def layer_step(cur_ref, nxt_ref):
        # neighborhood aggregation: A_hat[rows] @ XW_l + b_l
        # (bf16 operands, f32 accumulation on the MXU)
        h = jnp.dot(a_rows, cur_ref[...], preferred_element_type=jnp.float32)
        h = h + b_ref[0]

        # hidden layers: ReLU (dropout is identity in eval mode), then
        # immediately push this tile's rows of XW_{l+1} = relu(h) @ W[l+1]
        # into the other ping-pong buffer (overlaps the dense transform with
        # the HBM-bound aggregation; no serialized matmul at layer heads)
        @pl.when(jnp.logical_not(is_last))
        def _():
            h_act = jnp.maximum(h, 0.0).astype(jnp.bfloat16)
            nxt_ref[pl.ds(row0, tile_rows), :] = jnp.dot(
                h_act, w_ref[0], preferred_element_type=jnp.float32
            ).astype(jnp.bfloat16)

        # only the final layer's result ever touches HBM
        @pl.when(is_last)
        def _():
            o_ref[...] = h.astype(o_ref.dtype)

    # static ping-pong: even layers read xw_even / write xw_odd, odd layers
    # the reverse.  pl.when on the parity keeps every scratch index static.
    parity = l % 2

    @pl.when(parity == 0)
    def _():
        layer_step(xw_even, xw_odd)

    @pl.when(parity == 1)
    def _():
        layer_step(xw_odd, xw_even)


def graph_encoder_pallas(xw0, a_pad, w_stack, b_stack, *, n_valid, f_out):
    num_layers, f_pad, _ = w_stack.shape
    n_pad = a_pad.shape[0]
    n_tiles = n_pad // TILE_ROWS

    # per-generation VMEM budget (v5e/v6e: ~108 MiB, v7x: ~54 MiB)
    vmem_limit = min(int(_vmem_capacity_bytes() * 0.85), 110 * 1024 * 1024)

    # keep A_hat VMEM-resident across all layers when the (conservatively
    # double-buffered) full block plus scratch/pipeline buffers fit the budget
    resident_need = (2 * n_pad * n_pad * 2            # A_hat bf16, x2 buffers
                     + 2 * n_pad * f_pad * 2          # XW ping-pong (bf16)
                     + 2 * 2 * f_pad * f_pad * 2      # W bf16, double-buffered
                     + 2 * 2 * TILE_ROWS * f_pad * 4  # out f32, double-buffered
                     + 4 * f_pad * 4)
    a_resident = resident_need <= int(vmem_limit * 0.9)

    if a_resident:
        # constant index map -> DMA'd from HBM exactly once, reused every layer
        a_spec = pl.BlockSpec((n_pad, n_pad), lambda l, i: (0, 0))
    else:
        # streamed bf16 row tiles, 3-deep so the DMA engine keeps running
        # underneath MXU-heavy steps
        a_spec = pl.BlockSpec((TILE_ROWS, n_pad), lambda l, i: (i, 0),
                              pipeline_mode=pl.Buffered(3))

    def out_map(l, i):
        # park every non-final layer on block 0 (never written -> stale data
        # never reaches HBM); only the last layer walks the row tiles
        return (jnp.where(l == num_layers - 1, i, 0), 0)

    def w_map(l, i):
        # layer l consumes W[l+1] (feature transform feeding the next layer)
        return (jnp.minimum(l + 1, num_layers - 1), 0, 0)

    kernel = functools.partial(fused_gcn_kernel, tile_rows=TILE_ROWS,
                               num_layers=num_layers, a_resident=a_resident)
    out = pl.pallas_call(
        kernel,
        out_shape=jax.ShapeDtypeStruct((n_pad, f_pad), jnp.float32),
        grid_spec=pltpu.PrefetchScalarGridSpec(
            num_scalar_prefetch=0,
            grid=(num_layers, n_tiles),
            in_specs=[
                # XW_0 stays in HBM; one manual DMA seeds the VMEM scratch
                pl.BlockSpec(memory_space=pl.ANY),
                a_spec,
                pl.BlockSpec((1, f_pad, f_pad), w_map),
                pl.BlockSpec((1, 1, f_pad), lambda l, i: (l, 0, 0)),
            ],
            out_specs=pl.BlockSpec((TILE_ROWS, f_pad), out_map),
            scratch_shapes=[
                pltpu.VMEM((n_pad, f_pad), jnp.bfloat16),   # XW ping
                pltpu.VMEM((n_pad, f_pad), jnp.bfloat16),   # XW pong
                pltpu.SemaphoreType.DMA,                    # seed-copy sem
            ],
        ),
        compiler_params=pltpu.CompilerParams(
            # layer fusion carries state through the XW scratch across both
            # grid axes, so they must stay sequential on one TensorCore
            dimension_semantics=("arbitrary", "arbitrary"),
            vmem_limit_bytes=vmem_limit,
        ),
    )(xw0, a_pad, w_stack, b_stack)
    return out[:n_valid, :f_out]


# ---------------------------------------------------------------------------
# Glue: dense normalized adjacency from a COO edge_index (plain JAX)
# ---------------------------------------------------------------------------
def normalized_adjacency(edge_index, num_nodes):
    """A_hat = D^{-1/2} (A + remaining self-loops) D^{-1/2}.

    Duplicate edges are summed; self-loops are only added for nodes that do
    not already have one (matches PyG's add_remaining_self_loops).
    """
    src = edge_index[0]
    dst = edge_index[1]
    a = jnp.zeros((num_nodes, num_nodes), dtype=jnp.float32)
    a = a.at[dst, src].add(1.0)                      # message flows src -> dst
    diag = jnp.diagonal(a)
    a = a + jnp.diag(jnp.where(diag > 0.0, 0.0, 1.0))
    deg = jnp.sum(a, axis=1)
    d_inv_sqrt = jnp.where(deg > 0, 1.0 / jnp.sqrt(deg), 0.0)
    return a * d_inv_sqrt[:, None] * d_inv_sqrt[None, :]


# ---------------------------------------------------------------------------
# GraphEncoder: parameter init + forward
# ---------------------------------------------------------------------------
def init_graph_encoder_params(key, input_dim, hidden_dim, output_dim,
                              num_layers=2):
    dims = [input_dim] + [hidden_dim] * (num_layers - 1) + [output_dim]
    params = []
    for i in range(num_layers):
        key, wk = jax.random.split(key)
        fan_in, fan_out = dims[i], dims[i + 1]
        scale = jnp.sqrt(6.0 / (fan_in + fan_out))          # glorot-uniform
        w = jax.random.uniform(wk, (fan_in, fan_out), jnp.float32,
                               minval=-scale, maxval=scale)
        b = jnp.zeros((1, fan_out), dtype=jnp.float32)
        params.append((w, b))
    return params


def graph_encoder_forward(params, x, edge_index):
    n, f_in = x.shape
    num_layers = len(params)
    f_out = params[-1][0].shape[1]

    # pad features to lane-dense multiples of 128 and N to a row-tile multiple
    f_pad = _round_up(max([f_in] + [w.shape[1] for (w, _) in params]), LANE)
    n_pad = _round_up(max(n, TILE_ROWS), TILE_ROWS)

    a_hat = normalized_adjacency(edge_index, n)
    a_pad = jnp.zeros((n_pad, n_pad), jnp.bfloat16)
    a_pad = a_pad.at[:n, :n].set(a_hat.astype(jnp.bfloat16))

    x_pad = jnp.zeros((n_pad, f_pad), jnp.bfloat16)
    x_pad = x_pad.at[:n, :f_in].set(x.astype(jnp.bfloat16))

    w_stack = jnp.zeros((num_layers, f_pad, f_pad), jnp.bfloat16)
    b_stack = jnp.zeros((num_layers, 1, f_pad), jnp.float32)
    for l, (w, b) in enumerate(params):
        fi, fo = w.shape
        w_stack = w_stack.at[l, :fi, :fo].set(w.astype(jnp.bfloat16))
        b_stack = b_stack.at[l, :, :fo].set(b.astype(jnp.float32))

    # layer-0 feature transform hoisted to XLA (X is read exactly once);
    # keeps X out of kernel VMEM and removes the serialized layer-0 matmul
    xw0 = jnp.dot(x_pad, w_stack[0],
                  preferred_element_type=jnp.float32).astype(jnp.bfloat16)

    return graph_encoder_pallas(xw0, a_pad, w_stack, b_stack,
                                n_valid=n, f_out=f_out)


def graph_encoder_reference(params, x, edge_index):
    """Pure-JAX f32 reference for a sanity check."""
    a_hat = normalized_adjacency(edge_index, x.shape[0])
    h = x
    for (w, b) in params[:-1]:
        h = jnp.maximum(a_hat @ (h @ w) + b, 0.0)
    w, b = params[-1]
    return a_hat @ (h @ w) + b


# ---------------------------------------------------------------------------
if __name__ == "__main__":
    key = jax.random.PRNGKey(0)

    num_nodes = 16
    input_dim = 8
    hidden_dim = 32
    output_dim = 16
    num_layers = 2

    k_x, k_e, k_p = jax.random.split(key, 3)

    # node features
    x = jax.random.normal(k_x, (num_nodes, input_dim), dtype=jnp.float32)

    # random undirected COO edge_index (2, E)
    num_edges = 24
    src = jax.random.randint(k_e, (num_edges,), 0, num_nodes)
    dst = jax.random.randint(jax.random.fold_in(k_e, 1), (num_edges,), 0,
                             num_nodes)
    edge_index = jnp.stack(
        [jnp.concatenate([src, dst]), jnp.concatenate([dst, src])], axis=0
    ).astype(jnp.int32)

    params = init_graph_encoder_params(k_p, input_dim, hidden_dim, output_dim,
                                       num_layers)

    fwd = jax.jit(graph_encoder_forward)
    out = fwd(params, x, edge_index)
    jax.block_until_ready(out)

    assert out.shape == (num_nodes, output_dim)
    assert out.dtype == jnp.float32

    # loose tolerance: kernel uses bf16 operands with f32 accumulation
    ref = graph_encoder_reference(params, x, edge_index)
    assert jnp.allclose(out, ref, atol=7.5e-2, rtol=7.5e-2), (
        float(jnp.max(jnp.abs(out - ref))))

    print("KERNEL_OK")
</pallas_src>

<mosaic_0001>
module attributes {stable_mosaic.version = 11 : i64} {
  func.func private @main(%arg0: i32) attributes {dimension_semantics = [#tpu.dimension_semantics<core_parallel>], iteration_bounds = array<i64: 2>, tpu.core_type = #tpu.core_type<sc_scalar_subcore>, window_params = []} {
    return
  }
}

module attributes {stable_mosaic.version = 11 : i64} {
  func.func private @main(%arg0: i32) attributes {dimension_semantics = [#tpu.dimension_semantics<core_parallel>], iteration_bounds = array<i64: 2>, tpu.core_type = #tpu.core_type<sc_scalar_subcore>, window_params = []} {
    return
  }
}

module attributes {stable_mosaic.version = 11 : i64} {
  func.func @fused_gcn_kernel(%arg0: i32, %arg1: i32, %arg2: memref<256x128xbf16, #tpu.memory_space<any>>, %arg3: memref<256x256xbf16, #tpu.memory_space<vmem>>, %arg4: memref<1x128x128xbf16, #tpu.memory_space<vmem>>, %arg5: memref<1x1x128xf32, #tpu.memory_space<vmem>>, %arg6: memref<256x128xf32, #tpu.memory_space<vmem>>, %arg7: memref<256x128xbf16, #tpu.memory_space<vmem>>, %arg8: memref<256x128xbf16, #tpu.memory_space<vmem>>, %arg9: memref<!tpu.dma_semaphore, #tpu.memory_space<semaphore_mem>>) attributes {dimension_semantics = [#tpu.dimension_semantics<arbitrary>, #tpu.dimension_semantics<arbitrary>], iteration_bounds = array<i64: 2, 1>, scalar_prefetch = 0 : i64, scratch_operands = 3 : i64, tpu.core_type = #tpu.core_type<tc>, window_params = [{}, {pipeline_mode = #tpu.pipeline_mode<synchronous>, transform_indices = @transform_1, window_bounds = array<i64: 256, 256>}, {transform_indices = @transform_2, window_bounds = array<i64: 1, 128, 128>}, {transform_indices = @transform_3, window_bounds = array<i64: 1, 1, 128>}, {transform_indices = @transform_4, window_bounds = array<i64: 256, 128>}]} {
    %c256_i32 = arith.constant 256 : i32
    %0 = arith.muli %arg1, %c256_i32 : i32
    %1 = tpu.assume_multiple %0, 256 : i32
    %c1_i32 = arith.constant 1 : i32
    %2 = arith.cmpi eq, %arg0, %c1_i32 : i32
    %c0_i32 = arith.constant 0 : i32
    %3 = arith.cmpi eq, %arg0, %c0_i32 : i32
    %c0_i32_0 = arith.constant 0 : i32
    %4 = arith.cmpi eq, %arg1, %c0_i32_0 : i32
    %5 = arith.andi %3, %4 : i1
    %6 = arith.extui %5 : i1 to i32
    %c0_i32_1 = arith.constant 0 : i32
    %7 = arith.cmpi ne, %6, %c0_i32_1 : i32
    scf.if %7 {
      tpu.enqueue_dma source(%arg2 : memref<256x128xbf16, #tpu.memory_space<any>>) target(%arg7 : memref<256x128xbf16, #tpu.memory_space<vmem>>) target_semaphore(%arg9 : memref<!tpu.dma_semaphore, #tpu.memory_space<semaphore_mem>>)
      tpu.wait_dma2 semaphore(%arg9 : memref<!tpu.dma_semaphore, #tpu.memory_space<semaphore_mem>>) src(%arg2 : memref<256x128xbf16, #tpu.memory_space<any>>) dst(%arg7 : memref<256x128xbf16, #tpu.memory_space<vmem>>)
    } else {
    }
    %8 = arith.index_cast %1 : i32 to index
    %c0 = arith.constant 0 : index
    %9 = vector.load %arg3[%8, %c0] : memref<256x256xbf16, #tpu.memory_space<vmem>>, vector<256x256xbf16>
    %c2_i32 = arith.constant 2 : i32
    %c0_i32_2 = arith.constant 0 : i32
    %10 = arith.cmpi eq, %c2_i32, %c0_i32_2 : i32
    %c1_i32_3 = arith.constant 1 : i32
    %11 = arith.select %10, %c1_i32_3, %c2_i32 : i32
    %12 = arith.remsi %arg0, %11 : i32
    %c0_i32_4 = arith.constant 0 : i32
    %13 = arith.cmpi ne, %12, %c0_i32_4 : i32
    %c0_i32_5 = arith.constant 0 : i32
    %14 = arith.cmpi slt, %12, %c0_i32_5 : i32
    %c0_i32_6 = arith.constant 0 : i32
    %15 = arith.cmpi slt, %11, %c0_i32_6 : i32
    %16 = arith.xori %14, %15 : i1
    %17 = arith.andi %16, %13 : i1
    %18 = arith.addi %12, %11 : i32
    %19 = arith.select %17, %18, %12 : i32
    %c0_i32_7 = arith.constant 0 : i32
    %20 = arith.cmpi eq, %19, %c0_i32_7 : i32
    %21 = arith.extui %20 : i1 to i32
    %c0_i32_8 = arith.constant 0 : i32
    %22 = arith.cmpi ne, %21, %c0_i32_8 : i32
    scf.if %22 {
      %c0_11 = arith.constant 0 : index
      %c0_12 = arith.constant 0 : index
      %26 = vector.load %arg7[%c0_11, %c0_12] : memref<256x128xbf16, #tpu.memory_space<vmem>>, vector<256x128xbf16>
      %cst = arith.constant dense<0.000000e+00> : vector<256x128xf32>
      %27 = tpu.matmul %9, %26, %cst {dimension_numbers = #tpu.dot_dimension_numbers<[1], [0], [0], [1], [0, 0, 1, 1], [], []>} : vector<256x256xbf16>, vector<256x128xbf16>, vector<256x128xf32> -> vector<256x128xf32>
      %c0_13 = arith.constant 0 : index
      %c0_14 = arith.constant 0 : index
      %c0_15 = arith.constant 0 : index
      %28 = vector.load %arg5[%c0_13, %c0_14, %c0_15] : memref<1x1x128xf32, #tpu.memory_space<vmem>>, vector<1x1x128xf32>
      %29 = vector.shape_cast %28 : vector<1x1x128xf32> to vector<1x128xf32>
      %30 = vector.broadcast %29 : vector<1x128xf32> to vector<256x128xf32>
      %31 = arith.addf %27, %30 : vector<256x128xf32>
      %true = arith.constant true
      %32 = arith.xori %2, %true : i1
      %33 = arith.extui %32 : i1 to i32
      %c0_i32_16 = arith.constant 0 : i32
      %34 = arith.cmpi ne, %33, %c0_i32_16 : i32
      scf.if %34 {
        %cst_18 = arith.constant 0.000000e+00 : f32
        %37 = vector.broadcast %cst_18 : f32 to vector<256x128xf32>
        %38 = arith.maximumf %31, %37 : vector<256x128xf32>
        %39 = arith.truncf %38 : vector<256x128xf32> to vector<256x128xbf16>
        %c0_19 = arith.constant 0 : index
        %c0_20 = arith.constant 0 : index
        %c0_21 = arith.constant 0 : index
        %40 = vector.load %arg4[%c0_19, %c0_20, %c0_21] : memref<1x128x128xbf16, #tpu.memory_space<vmem>>, vector<1x128x128xbf16>
        %41 = vector.shape_cast %40 : vector<1x128x128xbf16> to vector<128x128xbf16>
        %cst_22 = arith.constant dense<0.000000e+00> : vector<256x128xf32>
        %42 = tpu.matmul %39, %41, %cst_22 {dimension_numbers = #tpu.dot_dimension_numbers<[1], [0], [0], [1], [0, 0, 1, 1], [], []>} : vector<256x128xbf16>, vector<128x128xbf16>, vector<256x128xf32> -> vector<256x128xf32>
        %43 = arith.truncf %42 : vector<256x128xf32> to vector<256x128xbf16>
        %44 = arith.index_cast %1 : i32 to index
        %c0_23 = arith.constant 0 : index
        %45 = vector.load %arg8[%44, %c0_23] : memref<256x128xbf16, #tpu.memory_space<vmem>>, vector<256x128xbf16>
        tpu.vector_store %arg8[%44, %c0_23], %43 {strides = array<i32>} : memref<256x128xbf16, #tpu.memory_space<vmem>>, vector<256x128xbf16>,
      } else {
      }
      %35 = arith.extui %2 : i1 to i32
      %c0_i32_17 = arith.constant 0 : i32
      %36 = arith.cmpi ne, %35, %c0_i32_17 : i32
      scf.if %36 {
        %c0_18 = arith.constant 0 : index
        %c0_19 = arith.constant 0 : index
        %37 = vector.load %arg6[%c0_18, %c0_19] : memref<256x128xf32, #tpu.memory_space<vmem>>, vector<256x128xf32>
        tpu.vector_store %arg6[%c0_18, %c0_19], %31 {strides = array<i32>} : memref<256x128xf32, #tpu.memory_space<vmem>>, vector<256x128xf32>,
      } else {
      }
    } else {
    }
    %c1_i32_9 = arith.constant 1 : i32
    %23 = arith.cmpi eq, %19, %c1_i32_9 : i32
    %24 = arith.extui %23 : i1 to i32
    %c0_i32_10 = arith.constant 0 : i32
    %25 = arith.cmpi ne, %24, %c0_i32_10 : i32
    scf.if %25 {
      %c0_11 = arith.constant 0 : index
      %c0_12 = arith.constant 0 : index
      %26 = vector.load %arg8[%c0_11, %c0_12] : memref<256x128xbf16, #tpu.memory_space<vmem>>, vector<256x128xbf16>
      %cst = arith.constant dense<0.000000e+00> : vector<256x128xf32>
      %27 = tpu.matmul %9, %26, %cst {dimension_numbers = #tpu.dot_dimension_numbers<[1], [0], [0], [1], [0, 0, 1, 1], [], []>} : vector<256x256xbf16>, vector<256x128xbf16>, vector<256x128xf32> -> vector<256x128xf32>
      %c0_13 = arith.constant 0 : index
      %c0_14 = arith.constant 0 : index
      %c0_15 = arith.constant 0 : index
      %28 = vector.load %arg5[%c0_13, %c0_14, %c0_15] : memref<1x1x128xf32, #tpu.memory_space<vmem>>, vector<1x1x128xf32>
      %29 = vector.shape_cast %28 : vector<1x1x128xf32> to vector<1x128xf32>
      %30 = vector.broadcast %29 : vector<1x128xf32> to vector<256x128xf32>
      %31 = arith.addf %27, %30 : vector<256x128xf32>
      %true = arith.constant true
      %32 = arith.xori %2, %true : i1
      %33 = arith.extui %32 : i1 to i32
      %c0_i32_16 = arith.constant 0 : i32
      %34 = arith.cmpi ne, %33, %c0_i32_16 : i32
      scf.if %34 {
        %cst_18 = arith.constant 0.000000e+00 : f32
        %37 = vector.broadcast %cst_18 : f32 to vector<256x128xf32>
        %38 = arith.maximumf %31, %37 : vector<256x128xf32>
        %39 = arith.truncf %38 : vector<256x128xf32> to vector<256x128xbf16>
        %c0_19 = arith.constant 0 : index
        %c0_20 = arith.constant 0 : index
        %c0_21 = arith.constant 0 : index
        %40 = vector.load %arg4[%c0_19, %c0_20, %c0_21] : memref<1x128x128xbf16, #tpu.memory_space<vmem>>, vector<1x128x128xbf16>
        %41 = vector.shape_cast %40 : vector<1x128x128xbf16> to vector<128x128xbf16>
        %cst_22 = arith.constant dense<0.000000e+00> : vector<256x128xf32>
        %42 = tpu.matmul %39, %41, %cst_22 {dimension_numbers = #tpu.dot_dimension_numbers<[1], [0], [0], [1], [0, 0, 1, 1], [], []>} : vector<256x128xbf16>, vector<128x128xbf16>, vector<256x128xf32> -> vector<256x128xf32>
        %43 = arith.truncf %42 : vector<256x128xf32> to vector<256x128xbf16>
        %44 = arith.index_cast %1 : i32 to index
        %c0_23 = arith.constant 0 : index
        %45 = vector.load %arg7[%44, %c0_23] : memref<256x128xbf16, #tpu.memory_space<vmem>>, vector<256x128xbf16>
        tpu.vector_store %arg7[%44, %c0_23], %43 {strides = array<i32>} : memref<256x128xbf16, #tpu.memory_space<vmem>>, vector<256x128xbf16>,
      } else {
      }
      %35 = arith.extui %2 : i1 to i32
      %c0_i32_17 = arith.constant 0 : i32
      %36 = arith.cmpi ne, %35, %c0_i32_17 : i32
      scf.if %36 {
        %c0_18 = arith.constant 0 : index
        %c0_19 = arith.constant 0 : index
        %37 = vector.load %arg6[%c0_18, %c0_19] : memref<256x128xf32, #tpu.memory_space<vmem>>, vector<256x128xf32>
        tpu.vector_store %arg6[%c0_18, %c0_19], %31 {strides = array<i32>} : memref<256x128xf32, #tpu.memory_space<vmem>>, vector<256x128xf32>,
      } else {
      }
    } else {
    }
    return
  }
  func.func @transform_1(%arg0: i32, %arg1: i32) -> (i32, i32) {
    %c0_i32 = arith.constant 0 : i32
    %c0_i32_0 = arith.constant 0 : i32
    %c0_i32_1 = arith.constant 0 : i32
    return %c0_i32, %c0_i32_0 : i32, i32
  }
  func.func @transform_2(%arg0: i32, %arg1: i32) -> (i32, i32, i32) {
    %c1_i32 = arith.constant 1 : i32
    %0 = arith.addi %arg0, %c1_i32 : i32
    %c1_i32_0 = arith.constant 1 : i32
    %1 = arith.minsi %0, %c1_i32_0 : i32
    %c0_i32 = arith.constant 0 : i32
    %c0_i32_1 = arith.constant 0 : i32
    %c0_i32_2 = arith.constant 0 : i32
    return %1, %c0_i32, %c0_i32_1 : i32, i32, i32
  }
  func.func @transform_3(%arg0: i32, %arg1: i32) -> (i32, i32, i32) {
    %c0_i32 = arith.constant 0 : i32
    %c0_i32_0 = arith.constant 0 : i32
    %c0_i32_1 = arith.constant 0 : i32
    return %arg0, %c0_i32, %c0_i32_0 : i32, i32, i32
  }
  func.func @transform_4(%arg0: i32, %arg1: i32) -> (i32, i32) {
    %c1_i32 = arith.constant 1 : i32
    %0 = arith.cmpi eq, %arg0, %c1_i32 : i32
    %c0_i32 = arith.constant 0 : i32
    %1 = arith.select %0, %arg1, %c0_i32 : i32
    %c0_i32_0 = arith.constant 0 : i32
    %c0_i32_1 = arith.constant 0 : i32
    return %1, %c0_i32_0 : i32, i32
  }
}

</mosaic_0001>

<llo_original>
// kernel: graph_encoder_forward.1
$region0: #{graph_encoder_forward.1}
  #allocation0 [shape = 'u32[]', space=smem, size = 0x4, offset = 0x4, fixed_abs, tag = 'smem constant byte address 0x4 - core index']
  #allocation1 [shape = 'u32[144,128]{1,0:T(1,128)}', space=vmem, size = 0x12000, scoped, tag = 'internal scratch']
  #allocation2 [shape = 'bf16[256,128]{1,0:T(16,128)(2,1)}', space=vmem, size = 0x10000, scoped, tag = 'scratch operand']
  #allocation3 [shape = 'bf16[256,128]{1,0:T(16,128)(2,1)}', space=vmem, size = 0x10000, scoped, tag = 'scratch operand']
  #allocation4 [shape = 's32[1]{0}', space=sflag, size = 0x4, scoped, tag = 'scratch operand']
  #allocation5 [shape = 's32[]', space=sflag, size = 0x4, offset = 0, fixed_abs, tag = 'sflag constant byte address 0x0 - dummy sync flag']
  %s0 = inlined_call_operand.vmem [shape: bf16[256,128], index: 0, kind: input, shape index: {}]
  %s1 = inlined_call_operand.vmem [shape: bf16[256,256], index: 1, kind: input, shape index: {}]
  %s2 = inlined_call_operand.vmem [shape: bf16[2,128,128], index: 2, kind: input, shape index: {}]
  %s3 = inlined_call_operand.vmem [shape: f32[2,1,128], index: 3, kind: input, shape index: {}]
  %s4 = inlined_call_operand.vmem [shape: f32[256,128], index: 4, kind: output, shape index: {}]
  %s5 = sld [smem:[#allocation0]]
  $region107: #{graph_encoder_forward.1} parent=0
    _
  %s7 = ssub.s32 1, %s5
  %s8 = scalar_select 0, %s7, %s5
  loop: start=0, step=1, limit=4
  $region2: #{graph_encoder_forward.1} parent=0 // loop_pre_header
    _
  $region3: #{graph_encoder_forward.1} parent=0 // loop_header
    %s10 = sphi 0, %s14
    %p11 = scmp.ge.s32.totalorder %s10, 4
    %s17 = sphi 0, %s29
    %s18 = sphi 0, %s25
    %s19 = sphi 0, %s17
    %s20 = sphi 0, %s18
    %s21 = sphi 0, %s19
    %s22 = sphi 0, %s20
    %s30 = sphi 0, %s30
    %s32 = sphi 0, %s30
    %s33 = sphi 0, %s32
    %s47 = sphi 0, %s33
    %s59 = sphi 0, %s61
    %s62 = sphi 0, %s59
    %s63 = sphi 0, %s62
    %s79 = sphi 0, %s63
    %s85 = sphi 0, %s87
    %s88 = sphi 0, %s85
    %s89 = sphi 0, %s88
    %s105 = sphi 0, %s89
    %s115 = sphi 0, %s117
    %s118 = sphi 0, %s115
    %s119 = sphi 0, %s118
    %s135 = sphi 0, %s119
  $region4: #{graph_encoder_forward.1} parent=0 // loop_header_branch
    %13 = sbr.rel (%p11) target = $region8
  $region5: #{graph_encoder_forward.1} parent=0 // loop_body
    %s15 = ssub.s32 %s10, 1
    %s16 = ssub.s32 %s10, 2
    %s23 = sadd.s32 1, %s18
    %p24 = scmp.ge.s32.totalorder %s23, 1
    %s25 = scalar_select %p24, 0, %s23
    %s26 = sadd.s32 1, %s17
    %s27 = scalar_select %p24, %s26, %s17
    %p28 = scmp.ge.s32.totalorder %s27, 2
    %s29 = scalar_select %p28, 0, %s27
    %s31 = sadd.s32 %s30, 1
    %p34 = scmp.eq.s32.totalorder %s10, 1
    %p35 = scmp.ne.s32.totalorder %s30, %s32
    %p36 = scmp.eq.s32.totalorder %s10, 0
    %p37 = por %p35, %p36
    %p38 = scmp.ne.s32.totalorder %s30, %s32
    %p39 = scmp.eq.s32.totalorder %s15, 1
    %p40 = por %p38, %p39
    %p41 = scmp.ne.s32.totalorder %s32, %s33
    %p42 = scmp.eq.s32.totalorder %s15, 0
    %p43 = por %p41, %p42
    %p44 = scmp.ne.s32.totalorder %s32, %s33
    %p45 = scmp.eq.s32.totalorder %s16, 1
    %p46 = por %p44, %p45
    %p48 = scmp.ne.s32.totalorder %s33, %s47
    %p49 = scmp.eq.s32.totalorder %s16, 0
    %p50 = por %p48, %p49
    %s51 = sadd.s32 %s17, 1
    %p52 = scmp.lt.s32.totalorder %s51, 1
    %s53 = scalar_select %p52, %s51, 1
    %s54 = sadd.s32 %s29, 1
    %p55 = scmp.lt.s32.totalorder %s54, 1
    %s56 = scalar_select %p55, %s54, 1
    %s57 = ssub.s32 %s53, %s56
    %p58 = scmp.eq.s32.totalorder %s57, 0
    %s60 = sadd.s32 %s59, 1
    %s61 = scalar_select %p58, %s59, %s60
    %p64 = pneg %p58
    %p65 = scmp.eq.s32.totalorder %s10, 1
    %p66 = por %p64, %p65
    %p67 = scmp.ne.s32.totalorder %s59, %s62
    %p68 = scmp.eq.s32.totalorder %s10, 0
    %p69 = por %p67, %p68
    %p70 = scmp.ne.s32.totalorder %s59, %s62
    %p71 = scmp.eq.s32.totalorder %s15, 1
    %p72 = por %p70, %p71
    %p73 = scmp.ne.s32.totalorder %s62, %s63
    %p74 = scmp.eq.s32.totalorder %s15, 0
    %p75 = por %p73, %p74
    %p76 = scmp.ne.s32.totalorder %s62, %s63
    %p77 = scmp.eq.s32.totalorder %s16, 1
    %p78 = por %p76, %p77
    %p80 = scmp.ne.s32.totalorder %s63, %s79
    %p81 = scmp.eq.s32.totalorder %s16, 0
    %p82 = por %p80, %p81
    %s83 = ssub.s32 %s17, %s29
    %p84 = scmp.eq.s32.totalorder %s83, 0
    %s86 = sadd.s32 %s85, 1
    %s87 = scalar_select %p84, %s85, %s86
    %p90 = pneg %p84
    %p91 = scmp.eq.s32.totalorder %s10, 1
    %p92 = por %p90, %p91
    %p93 = scmp.ne.s32.totalorder %s85, %s88
    %p94 = scmp.eq.s32.totalorder %s10, 0
    %p95 = por %p93, %p94
    %p96 = scmp.ne.s32.totalorder %s85, %s88
    %p97 = scmp.eq.s32.totalorder %s15, 1
    %p98 = por %p96, %p97
    %p99 = scmp.ne.s32.totalorder %s88, %s89
    %p100 = scmp.eq.s32.totalorder %s15, 0
    %p101 = por %p99, %p100
    %p102 = scmp.ne.s32.totalorder %s88, %s89
    %p103 = scmp.eq.s32.totalorder %s16, 1
    %p104 = por %p102, %p103
    %p106 = scmp.ne.s32.totalorder %s89, %s105
    %p107 = scmp.eq.s32.totalorder %s16, 0
    %p108 = por %p106, %p107
    %p109 = scmp.eq.s32.totalorder %s17, 1
    %s110 = scalar_select %p109, %s18, 0
    %p111 = scmp.eq.s32.totalorder %s29, 1
    %s112 = scalar_select %p111, %s25, 0
    %s113 = ssub.s32 %s110, %s112
    %p114 = scmp.eq.s32.totalorder %s113, 0
    %s116 = sadd.s32 %s115, 1
    %s117 = scalar_select %p114, %s115, %s116
    %p120 = pneg %p114
    %p121 = scmp.eq.s32.totalorder %s10, 1
    %p122 = por %p120, %p121
    %p123 = scmp.ne.s32.totalorder %s115, %s118
    %p124 = scmp.eq.s32.totalorder %s10, 0
    %p125 = por %p123, %p124
    %p126 = scmp.ne.s32.totalorder %s115, %s118
    %p127 = scmp.eq.s32.totalorder %s15, 1
    %p128 = por %p126, %p127
    %p129 = scmp.ne.s32.totalorder %s118, %s119
    %p130 = scmp.eq.s32.totalorder %s15, 0
    %p131 = por %p129, %p130
    %p132 = scmp.ne.s32.totalorder %s118, %s119
    %p133 = scmp.eq.s32.totalorder %s16, 1
    %p134 = por %p132, %p133
    %p136 = scmp.ne.s32.totalorder %s119, %s135
    %p137 = scmp.eq.s32.totalorder %s16, 0
    %p138 = por %p136, %p137
    %p139 = scmp.le.s32.totalorder 1, %s10
    %p140 = scmp.lt.s32.totalorder %s10, 3
    %p141 = pnand %p139, %p140
    %p142 = pneg %p141
    // Predicated region
    $region9: #{graph_encoder_forward.1} parent=5 // pred_check
      _
    $region10: #{graph_encoder_forward.1} parent=5 // pred_check_branch
      %144 = sbr.rel (%p141) target = $region12
    $region11: #{graph_encoder_forward.1} parent=5 // pred_region
      %s145 = ssub.s32 %s10, 1
      // Predicated region
      $region13: #{graph_encoder_forward.1} parent=11 // pred_check
        %p146 = pneg %p43
      $region14: #{graph_encoder_forward.1} parent=11 // pred_check_branch
        %148 = sbr.rel (%p146) target = $region16
      $region15: #{graph_encoder_forward.1} parent=11 // pred_region
        _
      $region16: #{graph_encoder_forward.1} parent=11 // pred_fallthru
        _
    $region12: #{graph_encoder_forward.1} parent=5 // pred_fallthru
      _
    %p149 = scmp.lt.s32.totalorder %s10, 2
    // Predicated region
    $region17: #{graph_encoder_forward.1} parent=5 // pred_check
      %p150 = pneg %p149
    $region18: #{graph_encoder_forward.1} parent=5 // pred_check_branch
      %152 = sbr.rel (%p150) target = $region20
    $region19: #{graph_encoder_forward.1} parent=5 // pred_region
      // Predicated region
      $region21: #{graph_encoder_forward.1} parent=19 // pred_check
        %p153 = pneg %p69
      $region22: #{graph_encoder_forward.1} parent=19 // pred_check_branch
        %155 = sbr.rel (%p153) target = $region24
      $region23: #{graph_encoder_forward.1} parent=19 // pred_region
        %s156 = sadd.s32 %s17, 1
        %p157 = scmp.lt.s32.totalorder %s156, 1
        %s158 = scalar_select %p157, %s156, 1
        %p159 = scmp.lt.s32.totalorder %s158, 1
        %s160 = scalar_select %p159, %s158, 1
        %s161 = smul.addr %s160, 16
        %s162 = smul.addr %s161, 4
        %s163 = scalar_lea.vmem %s2, %s162
        %s164 = sadd.s32 %s17, 1
        %p165 = scmp.lt.s32.totalorder %s164, 1
        %s166 = scalar_select %p165, %s164, 1
      $region24: #{graph_encoder_forward.1} parent=19 // pred_fallthru
        _
      // Predicated region
      $region25: #{graph_encoder_forward.1} parent=19 // pred_check
        %p167 = pneg %p95
      $region26: #{graph_encoder_forward.1} parent=19 // pred_check_branch
        %169 = sbr.rel (%p167) target = $region28
      $region27: #{graph_encoder_forward.1} parent=19 // pred_region
        %p170 = scmp.lt.s32.totalorder %s17, 1
        %s171 = scalar_select %p170, %s17, 1
        %s172 = scalar_lea.vmem %s3, %s171
      $region28: #{graph_encoder_forward.1} parent=19 // pred_fallthru
        _
    $region20: #{graph_encoder_forward.1} parent=5 // pred_fallthru
      _
    %p173 = scmp.le.s32.totalorder 1, %s10
    %p174 = scmp.lt.s32.totalorder %s10, 3
    %p175 = pnand %p173, %p174
    %p176 = pneg %p175
    // Predicated region
    $region29: #{graph_encoder_forward.1} parent=5 // pred_check
      _
    $region30: #{graph_encoder_forward.1} parent=5 // pred_check_branch
      %178 = sbr.rel (%p175) target = $region32
    $region31: #{graph_encoder_forward.1} parent=5 // pred_region
      %s179 = ssub.s32 %s10, 1
      %p180 = pneg %p43
      %p181 = pneg %p40
      %s182 = sadd.s32 %s19, 1
      %p183 = scmp.lt.s32.totalorder %s182, 1
      %s184 = scalar_select %p183, %s182, 1
      %p185 = scmp.lt.s32.totalorder %s184, 1
      %s186 = scalar_select %p185, %s184, 1
      %s187 = smul.addr %s186, 16
      %s188 = smul.addr %s187, 4
      %s189 = scalar_lea.vmem %s2, %s188
      %p190 = pneg %p75
      %p191 = pneg %p72
      %p192 = scmp.lt.s32.totalorder %s19, 1
      %s193 = scalar_select %p192, %s19, 1
      %s194 = scalar_lea.vmem %s3, %s193
      %p195 = pneg %p101
      %p196 = pneg %p98
      %p197 = pneg %p131
      %p198 = pneg %p128
      %p199 = scmp.eq.s32.totalorder %s19, 1
      %s200 = scalar_select %p199, %s20, 0
      %s201 = smul.u32 32, %s200
      %p202 = scmp.lt.s32.totalorder %s201, 31
      %s203 = scalar_select %p202, %s201, 31
      %s204 = smul.addr %s203, 8
      %s205 = scalar_lea.vmem %s4, %s204
      %s206 = sadd.s32 %s19, 1
      %p207 = scmp.lt.s32.totalorder %s206, 1
      %s208 = scalar_select %p207, %s206, 1
      %p209 = scmp.lt.s32.totalorder %s208, 1
      %s210 = scalar_select %p209, %s208, 1
      %s211 = smul.addr %s210, 16
      %s212 = smul.addr %s211, 4
      %s213 = scalar_lea.vmem %s2, %s212
      %s214 = sadd.s32 %s19, 1
      %p215 = scmp.lt.s32.totalorder %s214, 1
      %s216 = scalar_select %p215, %s214, 1
      %p217 = scmp.lt.s32.totalorder %s19, 1
      %s218 = scalar_select %p217, %s19, 1
      %s219 = scalar_lea.vmem %s3, %s218
      %p220 = scmp.eq.s32.totalorder %s19, 1
      %s221 = scalar_select %p220, %s20, 0
      %s222 = smul.u32 32, %s221
      %p223 = scmp.lt.s32.totalorder %s222, 31
      %s224 = scalar_select %p223, %s222, 31
      %s225 = smul.addr %s224, 8
      %s226 = scalar_lea.vmem %s4, %s225
      %p227 = scmp.eq.s32.totalorder %s19, 1
      %s228 = scalar_select %p227, %s20, 0
      %s229 = smul.u32 32, %s228
      %s231 = smul.u32 %s20, 256
      %p232 = scmp.eq.s32.totalorder %s19, 1
      %p233 = scmp.eq.s32.totalorder %s19, 0
      %p234 = scmp.eq.s32.totalorder %s20, 0
      %p235 = pnand %p233, %p234
      %p236 = pneg %p235
      // Predicated region
      $region33: #{graph_encoder_forward.1} parent=31 // pred_check
        _
      $region34: #{graph_encoder_forward.1} parent=31 // pred_check_branch
        %238 = sbr.rel (%p235) target = $region36
      $region35: #{graph_encoder_forward.1} parent=31 // pred_region
        %p240 = scmp.lt.u32.totalorder 128, 8
        %p241 = pneg %p240
        // Predicated region
        $region37: #{graph_encoder_forward.1} parent=35 // pred_check
          _
        $region38: #{graph_encoder_forward.1} parent=35 // pred_check_branch
          %243 = sbr.rel (%p240) target = $region40
        $region39: #{graph_encoder_forward.1} parent=35 // pred_region
          %s258 = sand.u32 128, 7
          %p259 = scmp.eq.s32.totalorder %s258, 0
          // Predicated region
          $region52: #{graph_encoder_forward.1} parent=39 // pred_check
            %p260 = pneg %p259
          $region53: #{graph_encoder_forward.1} parent=39 // pred_check_branch
            %262 = sbr.rel (%p260) target = $region55
          $region54: #{graph_encoder_forward.1} parent=39 // pred_region
            loop: start=0, step=1, limit=1
            $region56: #{graph_encoder_forward.1} parent=54 // loop_pre_header
              _
            $region57: #{graph_encoder_forward.1} parent=54 // loop_header
              %s264 = sphi 0, %s268
              %p265 = scmp.ge.s32.totalorder %s264, 1
              %s269 = sphi %s0, %s0
              %s270 = sphi [#allocation2], [#allocation2]
            $region58: #{graph_encoder_forward.1} parent=54 // loop_header_branch
              %267 = sbr.rel (%p265) target = $region62
            $region59: #{graph_encoder_forward.1} parent=54 // loop_body
              %v271 = vld [vmem:[%s269] sm:$0xff]
              %272 = vst [vmem:[%s270] sm:$0xff] %v271
              %v273 = vld [vmem:[%s269 + $0x8] sm:$0xff]
              %274 = vst [vmem:[%s270 + $0x8] sm:$0xff] %v273
              %v275 = vld [vmem:[%s269 + $0x10] sm:$0xff]
              %276 = vst [vmem:[%s270 + $0x10] sm:$0xff] %v275
              %v277 = vld [vmem:[%s269 + $0x18] sm:$0xff]
              %278 = vst [vmem:[%s270 + $0x18] sm:$0xff] %v277
              %v279 = vld [vmem:[%s269 + $0x20] sm:$0xff]
              %280 = vst [vmem:[%s270 + $0x20] sm:$0xff] %v279
              %v281 = vld [vmem:[%s269 + $0x28] sm:$0xff]
              %282 = vst [vmem:[%s270 + $0x28] sm:$0xff] %v281
              %v283 = vld [vmem:[%s269 + $0x30] sm:$0xff]
              %284 = vst [vmem:[%s270 + $0x30] sm:$0xff] %v283
              %v285 = vld [vmem:[%s269 + $0x38] sm:$0xff]
              %286 = vst [vmem:[%s270 + $0x38] sm:$0xff] %v285
              %v287 = vld [vmem:[%s269 + $0x40] sm:$0xff]
              %288 = vst [vmem:[%s270 + $0x40] sm:$0xff] %v287
              %v289 = vld [vmem:[%s269 + $0x48] sm:$0xff]
              %290 = vst [vmem:[%s270 + $0x48] sm:$0xff] %v289
              %v291 = vld [vmem:[%s269 + $0x50] sm:$0xff]
              %292 = vst [vmem:[%s270 + $0x50] sm:$0xff] %v291
              %v293 = vld [vmem:[%s269 + $0x58] sm:$0xff]
              %294 = vst [vmem:[%s270 + $0x58] sm:$0xff] %v293
              %v295 = vld [vmem:[%s269 + $0x60] sm:$0xff]
              %296 = vst [vmem:[%s270 + $0x60] sm:$0xff] %v295
              %v297 = vld [vmem:[%s269 + $0x68] sm:$0xff]
              %298 = vst [vmem:[%s270 + $0x68] sm:$0xff] %v297
              %v299 = vld [vmem:[%s269 + $0x70] sm:$0xff]
              %300 = vst [vmem:[%s270 + $0x70] sm:$0xff] %v299
              %v301 = vld [vmem:[%s269 + $0x78] sm:$0xff]
              %302 = vst [vmem:[%s270 + $0x78] sm:$0xff] %v301
            $region60: #{graph_encoder_forward.1} parent=54 // loop_footer
              %s268 = sadd.s32 1, %s264
            $region61: #{graph_encoder_forward.1} parent=54 // loop_footer_branch
              %263 = sbr.rel target = $region57
            $region62: #{graph_encoder_forward.1} parent=54 // loop_exit
              _
          $region55: #{graph_encoder_forward.1} parent=39 // pred_fallthru
            _
          %p303 = pneg %p259
          // Predicated region
          $region63: #{graph_encoder_forward.1} parent=39 // pred_check
            _
          $region64: #{graph_encoder_forward.1} parent=39 // pred_check_branch
            %305 = sbr.rel (%p259) target = $region66
          $region65: #{graph_encoder_forward.1} parent=39 // pred_region
            %s306 = sand.u32 128, 7
          $region66: #{graph_encoder_forward.1} parent=39 // pred_fallthru
            _
        $region40: #{graph_encoder_forward.1} parent=35 // pred_fallthru
          _
        // Predicated region
        $region41: #{graph_encoder_forward.1} parent=35 // pred_check
          %p244 = pneg %p240
        $region42: #{graph_encoder_forward.1} parent=35 // pred_check_branch
          %246 = sbr.rel (%p244) target = $region44
        $region43: #{graph_encoder_forward.1} parent=35 // pred_region
          %s247 = sshllo.u32 0, 128
          loop: start=0, step=1, limit=1
          $region45: #{graph_encoder_forward.1} parent=43 // loop_pre_header
            _
          $region46: #{graph_encoder_forward.1} parent=43 // loop_header
            %s249 = sphi 0, %s253
            %p250 = scmp.ge.s32.totalorder %s249, 1
            %s254 = sphi %s0, %s0
            %s255 = sphi [#allocation2], [#allocation2]
          $region47: #{graph_encoder_forward.1} parent=43 // loop_header_branch
            %252 = sbr.rel (%p250) target = $region51
          $region48: #{graph_encoder_forward.1} parent=43 // loop_body
            %v256 = vld [vmem:[%s254] sm:%s247]
            %257 = vst [vmem:[%s255] sm:%s247] %v256
          $region49: #{graph_encoder_forward.1} parent=43 // loop_footer
            %s253 = sadd.s32 1, %s249
          $region50: #{graph_encoder_forward.1} parent=43 // loop_footer_branch
            %248 = sbr.rel target = $region46
          $region51: #{graph_encoder_forward.1} parent=43 // loop_exit
            _
        $region44: #{graph_encoder_forward.1} parent=35 // pred_fallthru
          _
        // Predicated region
        $region67: #{graph_encoder_forward.1} parent=35 // pred_check
          _
        $region68: #{graph_encoder_forward.1} parent=35 // pred_check_branch
          %309 = sbr.rel (0) target = $region70
        $region69: #{graph_encoder_forward.1} parent=35 // pred_region
          %310 = vsyncadd [#allocation4], 2048
        $region70: #{graph_encoder_forward.1} parent=35 // pred_fallthru
          _
        %s311 = smul.u32 4, 32
        %s312 = smul.u32 %s311, 1
        %s313 = sshll.u32 %s312, 4
        %314 = dma.done [#allocation4], %s313
      $region36: #{graph_encoder_forward.1} parent=31 // pred_fallthru
        _
      %s315 = sshra.s32 %s231, 3
      %s316 = sand.u32 %s231, 7
      %s317 = smul.u32 %s315, 2
      %s318 = smul.addr %s317, 4
      %s319 = scalar_lea.vmem %s1, %s318
      %v320 = vld [vmem:[%s319] sm:$0xff]
      %v321 = vld [vmem:[%s319 + $0x8] sm:$0xff]
      %v322 = vld [vmem:[%s319 + $0x10] sm:$0xff]
      %v323 = vld [vmem:[%s319 + $0x18] sm:$0xff]
      %v324 = vld [vmem:[%s319 + $0x20] sm:$0xff]
      %v325 = vld [vmem:[%s319 + $0x28] sm:$0xff]
      %v326 = vld [vmem:[%s319 + $0x30] sm:$0xff]
      %v327 = vld [vmem:[%s319 + $0x38] sm:$0xff]
      %v328 = vld [vmem:[%s319 + $0x40] sm:$0xff]
      %v329 = vld [vmem:[%s319 + $0x48] sm:$0xff]
      %v330 = vld [vmem:[%s319 + $0x50] sm:$0xff]
      %v331 = vld [vmem:[%s319 + $0x58] sm:$0xff]
      %v332 = vld [vmem:[%s319 + $0x60] sm:$0xff]
      %v333 = vld [vmem:[%s319 + $0x68] sm:$0xff]
      %v334 = vld [vmem:[%s319 + $0x70] sm:$0xff]
      %v335 = vld [vmem:[%s319 + $0x78] sm:$0xff]
      %v336 = vld [vmem:[%s319 + $0x80] sm:$0xff]
      %v337 = vld [vmem:[%s319 + $0x88] sm:$0xff]
      %v338 = vld [vmem:[%s319 + $0x90] sm:$0xff]
      %v339 = vld [vmem:[%s319 + $0x98] sm:$0xff]
      %v340 = vld [vmem:[%s319 + $0xa0] sm:$0xff]
      %v341 = vld [vmem:[%s319 + $0xa8] sm:$0xff]
      %v342 = vld [vmem:[%s319 + $0xb0] sm:$0xff]
      %v343 = vld [vmem:[%s319 + $0xb8] sm:$0xff]
      %v344 = vld [vmem:[%s319 + $0xc0] sm:$0xff]
      %v345 = vld [vmem:[%s319 + $0xc8] sm:$0xff]
      %v346 = vld [vmem:[%s319 + $0xd0] sm:$0xff]
      %v347 = vld [vmem:[%s319 + $0xd8] sm:$0xff]
      %v348 = vld [vmem:[%s319 + $0xe0] sm:$0xff]
      %v349 = vld [vmem:[%s319 + $0xe8] sm:$0xff]
      %v350 = vld [vmem:[%s319 + $0xf0] sm:$0xff]
      %v351 = vld [vmem:[%s319 + $0xf8] sm:$0xff]
      %p352 = scmp.lt.s32.totalorder %s19, 0
      %s353 = ssub.s32 0, %s19
      %s354 = scalar_select %p352, %s353, %s19
      %s355 = sand.u32 %s354, 1
      %s356 = ssub.s32 0, %s355
      %s357 = scalar_select %p352, %s356, %s355
      %p358 = scmp.ne.s32.totalorder %s357, 0
      %p359 = scmp.lt.s32.totalorder %s357, 0
      %p360 = pnand %p359, %p358
      %p361 = pneg %p360
      %s362 = sadd.s32 %s357, 2
      %s363 = scalar_select %p361, %s362, %s357
      %p364 = scmp.eq.s32.totalorder %s363, 0
      // Predicated region
      $region71: #{graph_encoder_forward.1} parent=31 // pred_check
        %p365 = pneg %p364
      $region72: #{graph_encoder_forward.1} parent=31 // pred_check_branch
        %367 = sbr.rel (%p365) target = $region74
      $region73: #{graph_encoder_forward.1} parent=31 // pred_region
        %v368 = vld [vmem:[#allocation2] sm:$0xff]
        %v369 = vld [vmem:[#allocation2 + $0x8] sm:$0xff]
        %v370 = vld [vmem:[#allocation2 + $0x10] sm:$0xff]
        %v371 = vld [vmem:[#allocation2 + $0x18] sm:$0xff]
        %v372 = vld [vmem:[#allocation2 + $0x20] sm:$0xff]
        %v373 = vld [vmem:[#allocation2 + $0x28] sm:$0xff]
        %v374 = vld [vmem:[#allocation2 + $0x30] sm:$0xff]
        %v375 = vld [vmem:[#allocation2 + $0x38] sm:$0xff]
        %v376 = vld [vmem:[#allocation2 + $0x40] sm:$0xff]
        %v377 = vld [vmem:[#allocation2 + $0x48] sm:$0xff]
        %v378 = vld [vmem:[#allocation2 + $0x50] sm:$0xff]
        %v379 = vld [vmem:[#allocation2 + $0x58] sm:$0xff]
        %v380 = vld [vmem:[#allocation2 + $0x60] sm:$0xff]
        %v381 = vld [vmem:[#allocation2 + $0x68] sm:$0xff]
        %v382 = vld [vmem:[#allocation2 + $0x70] sm:$0xff]
        %v383 = vld [vmem:[#allocation2 + $0x78] sm:$0xff]
        %v384 = vld [vmem:[%s219] sm:$0x1]
        %v386 = vlaneseq
        %v387 = vshrl.u32 %v386, 7
        %v388 = vsub.s32 0, %v387
        %v389 = vrot.slane %v384, %v388
        %v423 = vunpack.c.l.b16 %v320
        %v424 = vunpack.c.h.b16 %v320
        %v425 = vunpack.c.l.b16 %v321
        %v426 = vunpack.c.h.b16 %v321
        %v427 = vunpack.c.l.b16 %v322
        %v428 = vunpack.c.h.b16 %v322
        %v429 = vunpack.c.l.b16 %v323
        %v430 = vunpack.c.h.b16 %v323
        %v431 = vunpack.c.l.b16 %v324
        %v432 = vunpack.c.h.b16 %v324
        %v433 = vunpack.c.l.b16 %v325
        %v434 = vunpack.c.h.b16 %v325
        %v435 = vunpack.c.l.b16 %v326
        %v436 = vunpack.c.h.b16 %v326
        %v437 = vunpack.c.l.b16 %v327
        %v438 = vunpack.c.h.b16 %v327
        %v439 = vunpack.c.l.b16 %v328
        %v440 = vunpack.c.h.b16 %v328
        %v441 = vunpack.c.l.b16 %v329
        %v442 = vunpack.c.h.b16 %v329
        %v443 = vunpack.c.l.b16 %v330
        %v444 = vunpack.c.h.b16 %v330
        %v445 = vunpack.c.l.b16 %v331
        %v446 = vunpack.c.h.b16 %v331
        %v447 = vunpack.c.l.b16 %v332
        %v448 = vunpack.c.h.b16 %v332
        %v449 = vunpack.c.l.b16 %v333
        %v450 = vunpack.c.h.b16 %v333
        %v451 = vunpack.c.l.b16 %v334
        %v452 = vunpack.c.h.b16 %v334
        %v453 = vunpack.c.l.b16 %v335
        %v454 = vunpack.c.h.b16 %v335
        %v455 = vunpack.c.l.b16 %v336
        %v456 = vunpack.c.h.b16 %v336
        %v457 = vunpack.c.l.b16 %v337
        %v458 = vunpack.c.h.b16 %v337
        %v459 = vunpack.c.l.b16 %v338
        %v460 = vunpack.c.h.b16 %v338
        %v461 = vunpack.c.l.b16 %v339
        %v462 = vunpack.c.h.b16 %v339
        %v463 = vunpack.c.l.b16 %v340
        %v464 = vunpack.c.h.b16 %v340
        %v465 = vunpack.c.l.b16 %v341
        %v466 = vunpack.c.h.b16 %v341
        %v467 = vunpack.c.l.b16 %v342
        %v468 = vunpack.c.h.b16 %v342
        %v469 = vunpack.c.l.b16 %v343
        %v470 = vunpack.c.h.b16 %v343
        %v471 = vunpack.c.l.b16 %v344
        %v472 = vunpack.c.h.b16 %v344
        %v473 = vunpack.c.l.b16 %v345
        %v474 = vunpack.c.h.b16 %v345
        %v475 = vunpack.c.l.b16 %v346
        %v476 = vunpack.c.h.b16 %v346
        %v477 = vunpack.c.l.b16 %v347
        %v478 = vunpack.c.h.b16 %v347
        %v479 = vunpack.c.l.b16 %v348
        %v480 = vunpack.c.h.b16 %v348
        %v481 = vunpack.c.l.b16 %v349
        %v482 = vunpack.c.h.b16 %v349
        %v483 = vunpack.c.l.b16 %v350
        %v484 = vunpack.c.h.b16 %v350
        %v485 = vunpack.c.l.b16 %v351
        %v486 = vunpack.c.h.b16 %v351
        %v487 = vpack.c.b16 %v425, %v423
        %v488 = vpack.c.b16 %v426, %v424
        %v489 = vpack.c.b16 %v429, %v427
        %v490 = vpack.c.b16 %v430, %v428
        %v491 = vpack.c.b16 %v433, %v431
        %v492 = vpack.c.b16 %v434, %v432
        %v493 = vpack.c.b16 %v437, %v435
        %v494 = vpack.c.b16 %v438, %v436
        %v495 = vpack.c.b16 %v441, %v439
        %v496 = vpack.c.b16 %v442, %v440
        %v497 = vpack.c.b16 %v445, %v443
        %v498 = vpack.c.b16 %v446, %v444
        %v499 = vpack.c.b16 %v449, %v447
        %v500 = vpack.c.b16 %v450, %v448
        %v501 = vpack.c.b16 %v453, %v451
        %v502 = vpack.c.b16 %v454, %v452
        %v503 = vpack.c.b16 %v457, %v455
        %v504 = vpack.c.b16 %v458, %v456
        %v505 = vpack.c.b16 %v461, %v459
        %v506 = vpack.c.b16 %v462, %v460
        %v507 = vpack.c.b16 %v465, %v463
        %v508 = vpack.c.b16 %v466, %v464
        %v509 = vpack.c.b16 %v469, %v467
        %v510 = vpack.c.b16 %v470, %v468
        %v511 = vpack.c.b16 %v473, %v471
        %v512 = vpack.c.b16 %v474, %v472
        %v513 = vpack.c.b16 %v477, %v475
        %v514 = vpack.c.b16 %v478, %v476
        %v515 = vpack.c.b16 %v481, %v479
        %v516 = vpack.c.b16 %v482, %v480
        %v517 = vpack.c.b16 %v485, %v483
        %v518 = vpack.c.b16 %v486, %v484
        %551 = vmatprep.subr.bf16.mxu0 0
        %552 = vmatpush1.bf16.msra.mxu0 %v368
        %553 = vmatprep.subr.bf16.mxu0 0
        %554 = vmatpush1.bf16.msra.mxu0 %v369
        %555 = vmatprep.subr.bf16.mxu0 0
        %556 = vmatpush1.bf16.msra.mxu0 %v370
        %557 = vmatprep.subr.bf16.mxu0 0
        %558 = vmatpush1.bf16.msra.mxu0 %v371
        %559 = vmatprep.subr.bf16.mxu0 0
        %560 = vmatpush1.bf16.msra.mxu0 %v372
        %561 = vmatprep.subr.bf16.mxu0 0
        %562 = vmatpush1.bf16.msra.mxu0 %v373
        %563 = vmatprep.subr.bf16.mxu0 0
        %564 = vmatpush1.bf16.msra.mxu0 %v374
        %565 = vmatprep.subr.bf16.mxu0 0
        %566 = vmatpush1.bf16.msra.mxu0 %v375
        %567 = vmatprep.subr.bf16.mxu0 0
        %568 = vmatpush1.bf16.msra.mxu0 %v376
        %569 = vmatprep.subr.bf16.mxu0 0
        %570 = vmatpush1.bf16.msra.mxu0 %v377
        %571 = vmatprep.subr.bf16.mxu0 0
        %572 = vmatpush1.bf16.msra.mxu0 %v378
        %573 = vmatprep.subr.bf16.mxu0 0
        %574 = vmatpush1.bf16.msra.mxu0 %v379
        %575 = vmatprep.subr.bf16.mxu0 0
        %576 = vmatpush1.bf16.msra.mxu0 %v380
        %577 = vmatprep.subr.bf16.mxu0 0
        %578 = vmatpush1.bf16.msra.mxu0 %v381
        %579 = vmatprep.subr.bf16.mxu0 0
        %580 = vmatpush1.bf16.msra.mxu0 %v382
        %581 = vmatprep.subr.bf16.mxu0 0
        %582 = vmatpush1.bf16.msra.mxu0 %v383
        %583 = vmatprep.mubr.bf16.mxu0 %v488
        %584 = vmatmul.mubr.bf16.gmra.mrb[0].mxu0 %v487
        %v585 = vpop.f32.mrb[0].mxu0
        %v586 = vadd.f32 %v389, %v585
        %v587 = vpop.f32.mrb[0].mxu0
        %v588 = vpop.f32.mrb[0].mxu0
        %v589 = vadd.f32 %v389, %v588
        %v590 = vpop.f32.mrb[0].mxu0
        %591 = vmatprep.mubr.bf16.mxu0 %v490
        %592 = vmatmul.mubr.bf16.gmra.mrb[0].mxu0 %v489
        %v593 = vpop.f32.mrb[0].mxu0
        %v594 = vadd.f32 %v389, %v593
        %v595 = vpop.f32.mrb[0].mxu0
        %v596 = vpop.f32.mrb[0].mxu0
        %v597 = vadd.f32 %v389, %v596
        %v598 = vpop.f32.mrb[0].mxu0
        %599 = vmatprep.mubr.bf16.mxu0 %v492
        %600 = vmatmul.mubr.bf16.gmra.mrb[0].mxu0 %v491
        %v601 = vpop.f32.mrb[0].mxu0
        %v602 = vadd.f32 %v389, %v601
        %v603 = vpop.f32.mrb[0].mxu0
        %v604 = vpop.f32.mrb[0].mxu0
        %v605 = vadd.f32 %v389, %v604
        %v606 = vpop.f32.mrb[0].mxu0
        %607 = vmatprep.mubr.bf16.mxu0 %v494
        %608 = vmatmul.mubr.bf16.gmra.mrb[0].mxu0 %v493
        %v609 = vpop.f32.mrb[0].mxu0
        %v610 = vadd.f32 %v389, %v609
        %v611 = vpop.f32.mrb[0].mxu0
        %v612 = vpop.f32.mrb[0].mxu0
        %v613 = vadd.f32 %v389, %v612
        %v614 = vpop.f32.mrb[0].mxu0
        %615 = vmatprep.mubr.bf16.mxu0 %v496
        %616 = vmatmul.mubr.bf16.gmra.mrb[0].mxu0 %v495
        %v617 = vpop.f32.mrb[0].mxu0
        %v618 = vadd.f32 %v389, %v617
        %v619 = vpop.f32.mrb[0].mxu0
        %v620 = vpop.f32.mrb[0].mxu0
        %v621 = vadd.f32 %v389, %v620
        %v622 = vpop.f32.mrb[0].mxu0
        %623 = vmatprep.mubr.bf16.mxu0 %v498
        %624 = vmatmul.mubr.bf16.gmra.mrb[0].mxu0 %v497
        %v625 = vpop.f32.mrb[0].mxu0
        %v626 = vadd.f32 %v389, %v625
        %v627 = vpop.f32.mrb[0].mxu0
        %v628 = vpop.f32.mrb[0].mxu0
        %v629 = vadd.f32 %v389, %v628
        %v630 = vpop.f32.mrb[0].mxu0
        %631 = vmatprep.mubr.bf16.mxu0 %v500
        %632 = vmatmul.mubr.bf16.gmra.mrb[0].mxu0 %v499
        %v633 = vpop.f32.mrb[0].mxu0
        %v634 = vadd.f32 %v389, %v633
        %v635 = vpop.f32.mrb[0].mxu0
        %v636 = vpop.f32.mrb[0].mxu0
        %v637 = vadd.f32 %v389, %v636
        %v638 = vpop.f32.mrb[0].mxu0
        %639 = vmatprep.mubr.bf16.mxu0 %v502
        %640 = vmatmul.mubr.bf16.gmra.mrb[0].mxu0 %v501
        %v641 = vpop.f32.mrb[0].mxu0
        %v642 = vadd.f32 %v389, %v641
        %v643 = vpop.f32.mrb[0].mxu0
        %v644 = vpop.f32.mrb[0].mxu0
        %v645 = vadd.f32 %v389, %v644
        %v646 = vpop.f32.mrb[0].mxu0
        %647 = vmatprep.mubr.bf16.mxu0 %v504
        %648 = vmatmul.mubr.bf16.gmra.mrb[0].mxu0 %v503
        %v649 = vpop.f32.mrb[0].mxu0
        %v650 = vadd.f32 %v389, %v649
        %v651 = vpop.f32.mrb[0].mxu0
        %v652 = vpop.f32.mrb[0].mxu0
        %v653 = vadd.f32 %v389, %v652
        %v654 = vpop.f32.mrb[0].mxu0
        %655 = vmatprep.mubr.bf16.mxu0 %v506
        %656 = vmatmul.mubr.bf16.gmra.mrb[0].mxu0 %v505
        %v657 = vpop.f32.mrb[0].mxu0
        %v658 = vadd.f32 %v389, %v657
        %v659 = vpop.f32.mrb[0].mxu0
        %v660 = vpop.f32.mrb[0].mxu0
        %v661 = vadd.f32 %v389, %v660
        %v662 = vpop.f32.mrb[0].mxu0
        %663 = vmatprep.mubr.bf16.mxu0 %v508
        %664 = vmatmul.mubr.bf16.gmra.mrb[0].mxu0 %v507
        %v665 = vpop.f32.mrb[0].mxu0
        %v666 = vadd.f32 %v389, %v665
        %v667 = vpop.f32.mrb[0].mxu0
        %v668 = vpop.f32.mrb[0].mxu0
        %v669 = vadd.f32 %v389, %v668
        %v670 = vpop.f32.mrb[0].mxu0
        %671 = vmatprep.mubr.bf16.mxu0 %v510
        %672 = vmatmul.mubr.bf16.gmra.mrb[0].mxu0 %v509
        %v673 = vpop.f32.mrb[0].mxu0
        %v674 = vadd.f32 %v389, %v673
        %v675 = vpop.f32.mrb[0].mxu0
        %v676 = vpop.f32.mrb[0].mxu0
        %v677 = vadd.f32 %v389, %v676
        %v678 = vpop.f32.mrb[0].mxu0
        %679 = vmatprep.mubr.bf16.mxu0 %v512
        %680 = vmatmul.mubr.bf16.gmra.mrb[0].mxu0 %v511
        %v681 = vpop.f32.mrb[0].mxu0
        %v682 = vadd.f32 %v389, %v681
        %v683 = vpop.f32.mrb[0].mxu0
        %v684 = vpop.f32.mrb[0].mxu0
        %v685 = vadd.f32 %v389, %v684
        %v686 = vpop.f32.mrb[0].mxu0
        %687 = vmatprep.mubr.bf16.mxu0 %v514
        %688 = vmatmul.mubr.bf16.gmra.mrb[0].mxu0 %v513
        %v689 = vpop.f32.mrb[0].mxu0
        %v690 = vadd.f32 %v389, %v689
        %v691 = vpop.f32.mrb[0].mxu0
        %v692 = vpop.f32.mrb[0].mxu0
        %v693 = vadd.f32 %v389, %v692
        %v694 = vpop.f32.mrb[0].mxu0
        %695 = vmatprep.mubr.bf16.mxu0 %v516
        %696 = vmatmul.mubr.bf16.gmra.mrb[0].mxu0 %v515
        %v697 = vpop.f32.mrb[0].mxu0
        %v698 = vadd.f32 %v389, %v697
        %v699 = vpop.f32.mrb[0].mxu0
        %v700 = vpop.f32.mrb[0].mxu0
        %v701 = vadd.f32 %v389, %v700
        %v702 = vpop.f32.mrb[0].mxu0
        %703 = vmatprep.mubr.bf16.mxu0 %v518
        %704 = vmatmul.mubr.bf16.gmra.mrb[0].mxu0 %v517
        %v705 = vpop.f32.mrb[0].mxu0
        %v706 = vadd.f32 %v389, %v705
        %v707 = vpop.f32.mrb[0].mxu0
        %v708 = vpop.f32.mrb[0].mxu0
        %v709 = vadd.f32 %v389, %v708
        %v710 = vpop.f32.mrb[0].mxu0
        %711 = vdwg.mxu0
        %p712 = scmp.ne.s32.totalorder %s19, 1
        // Predicated region
        $region75: #{graph_encoder_forward.1} parent=73 // pred_check
          %p713 = pneg %p712
        $region76: #{graph_encoder_forward.1} parent=73 // pred_check_branch
          %715 = sbr.rel (%p713) target = $region78
        $region77: #{graph_encoder_forward.1} parent=73 // pred_region
          %v716 = vmax.f32 %v586, 0.0
          %v717 = vmax.f32 %v589, 0.0
          %v718 = vmax.f32 %v594, 0.0
          %v719 = vmax.f32 %v597, 0.0
          %v720 = vmax.f32 %v602, 0.0
          %v721 = vmax.f32 %v605, 0.0
          %v722 = vmax.f32 %v610, 0.0
          %v723 = vmax.f32 %v613, 0.0
          %v724 = vmax.f32 %v618, 0.0
          %v725 = vmax.f32 %v621, 0.0
          %v726 = vmax.f32 %v626, 0.0
          %v727 = vmax.f32 %v629, 0.0
          %v728 = vmax.f32 %v634, 0.0
          %v729 = vmax.f32 %v637, 0.0
          %v730 = vmax.f32 %v642, 0.0
          %v731 = vmax.f32 %v645, 0.0
          %v732 = vmax.f32 %v650, 0.0
          %v733 = vmax.f32 %v653, 0.0
          %v734 = vmax.f32 %v658, 0.0
          %v735 = vmax.f32 %v661, 0.0
          %v736 = vmax.f32 %v666, 0.0
          %v737 = vmax.f32 %v669, 0.0
          %v738 = vmax.f32 %v674, 0.0
          %v739 = vmax.f32 %v677, 0.0
          %v740 = vmax.f32 %v682, 0.0
          %v741 = vmax.f32 %v685, 0.0
          %v742 = vmax.f32 %v690, 0.0
          %v743 = vmax.f32 %v693, 0.0
          %v744 = vmax.f32 %v698, 0.0
          %v745 = vmax.f32 %v701, 0.0
          %v746 = vmax.f32 %v706, 0.0
          %v747 = vmax.f32 %v709, 0.0
          %v748 = vpack.c.bf16 %v717, %v716
          %v749 = vpack.c.bf16 %v719, %v718
          %v750 = vpack.c.bf16 %v721, %v720
          %v751 = vpack.c.bf16 %v723, %v722
          %v752 = vpack.c.bf16 %v725, %v724
          %v753 = vpack.c.bf16 %v727, %v726
          %v754 = vpack.c.bf16 %v729, %v728
          %v755 = vpack.c.bf16 %v731, %v730
          %v756 = vpack.c.bf16 %v733, %v732
          %v757 = vpack.c.bf16 %v735, %v734
          %v758 = vpack.c.bf16 %v737, %v736
          %v759 = vpack.c.bf16 %v739, %v738
          %v760 = vpack.c.bf16 %v741, %v740
          %v761 = vpack.c.bf16 %v743, %v742
          %v762 = vpack.c.bf16 %v745, %v744
          %v763 = vpack.c.bf16 %v747, %v746
          %v764 = vld [vmem:[%s213] sm:$0xf]
          %v765 = vld [vmem:[%s213 + $0x4] sm:$0xf]
          %v766 = vld [vmem:[%s213 + $0x8] sm:$0xf]
          %v767 = vld [vmem:[%s213 + $0xc] sm:$0xf]
          %v768 = vld [vmem:[%s213 + $0x10] sm:$0xf]
          %v769 = vld [vmem:[%s213 + $0x14] sm:$0xf]
          %v770 = vld [vmem:[%s213 + $0x18] sm:$0xf]
          %v771 = vld [vmem:[%s213 + $0x1c] sm:$0xf]
          %v772 = vld [vmem:[%s213 + $0x20] sm:$0xf]
          %v773 = vld [vmem:[%s213 + $0x24] sm:$0xf]
          %v774 = vld [vmem:[%s213 + $0x28] sm:$0xf]
          %v775 = vld [vmem:[%s213 + $0x2c] sm:$0xf]
          %v776 = vld [vmem:[%s213 + $0x30] sm:$0xf]
          %v777 = vld [vmem:[%s213 + $0x34] sm:$0xf]
          %v778 = vld [vmem:[%s213 + $0x38] sm:$0xf]
          %v779 = vld [vmem:[%s213 + $0x3c] sm:$0xf]
          %v796 = vunpack.c.l.b16 %v764
          %v797 = vunpack.c.l.b16 %v765
          %v798 = vunpack.c.l.b16 %v766
          %v799 = vunpack.c.l.b16 %v767
          %v800 = vunpack.c.l.b16 %v768
          %v801 = vunpack.c.l.b16 %v769
          %v802 = vunpack.c.l.b16 %v770
          %v803 = vunpack.c.l.b16 %v771
          %v804 = vunpack.c.l.b16 %v772
          %v805 = vunpack.c.l.b16 %v773
          %v806 = vunpack.c.l.b16 %v774
          %v807 = vunpack.c.l.b16 %v775
          %v808 = vunpack.c.l.b16 %v776
          %v809 = vunpack.c.l.b16 %v777
          %v810 = vunpack.c.l.b16 %v778
          %v811 = vunpack.c.l.b16 %v779
          %v812 = vpack.c.b16 %v797, %v796
          %v813 = vpack.c.b16 %v799, %v798
          %v814 = vpack.c.b16 %v801, %v800
          %v815 = vpack.c.b16 %v803, %v802
          %v816 = vpack.c.b16 %v805, %v804
          %v817 = vpack.c.b16 %v807, %v806
          %v818 = vpack.c.b16 %v809, %v808
          %v819 = vpack.c.b16 %v811, %v810
          %828 = vmatprep.subr.bf16.mxu0 0
          %829 = vmatpush1.bf16.msra.mxu0 %v812
          %830 = vmatprep.subr.bf16.mxu0 0
          %831 = vmatpush1.bf16.msra.mxu0 %v813
          %832 = vmatprep.subr.bf16.mxu0 0
          %833 = vmatpush1.bf16.msra.mxu0 %v814
          %834 = vmatprep.subr.bf16.mxu0 0
          %835 = vmatpush1.bf16.msra.mxu0 %v815
          %836 = vmatprep.subr.bf16.mxu0 0
          %837 = vmatpush1.bf16.msra.mxu0 %v816
          %838 = vmatprep.subr.bf16.mxu0 0
          %839 = vmatpush1.bf16.msra.mxu0 %v817
          %840 = vmatprep.subr.bf16.mxu0 0
          %841 = vmatpush1.bf16.msra.mxu0 %v818
          %842 = vmatprep.subr.bf16.mxu0 0
          %843 = vmatpush1.bf16.msra.mxu0 %v819
          %844 = vmatprep.subr.bf16.mxu0 0
          %845 = vmatpush1.bf16.msra.mxu0 0
          %846 = vmatprep.subr.bf16.mxu0 0
          %847 = vmatpush1.bf16.msra.mxu0 0
          %848 = vmatprep.subr.bf16.mxu0 0
          %849 = vmatpush1.bf16.msra.mxu0 0
          %850 = vmatprep.subr.bf16.mxu0 0
          %851 = vmatpush1.bf16.msra.mxu0 0
          %852 = vmatprep.subr.bf16.mxu0 0
          %853 = vmatpush1.bf16.msra.mxu0 0
          %854 = vmatprep.subr.bf16.mxu0 0
          %855 = vmatpush1.bf16.msra.mxu0 0
          %856 = vmatprep.subr.bf16.mxu0 0
          %857 = vmatpush1.bf16.msra.mxu0 0
          %858 = vmatprep.subr.bf16.mxu0 0
          %859 = vmatpush1.bf16.msra.mxu0 0
          %860 = vmatprep.mubr.bf16.mxu0 0
          %861 = vmatmul.mubr.bf16.gmra.mrb[0].mxu0 %v748
          %v862 = vpop.f32.mrb[0].mxu0
          %v863 = vadd.f32 0.0, %v862
          %v864 = vpop.f32.mrb[0].mxu0
          %v865 = vpop.f32.mrb[0].mxu0
          %v866 = vadd.f32 0.0, %v865
          %v867 = vpop.f32.mrb[0].mxu0
          %868 = vmatprep.mubr.bf16.mxu0 0
          %869 = vmatmul.mubr.bf16.gmra.mrb[0].mxu0 %v749
          %v870 = vpop.f32.mrb[0].mxu0
          %v871 = vadd.f32 0.0, %v870
          %v872 = vpop.f32.mrb[0].mxu0
          %v873 = vpop.f32.mrb[0].mxu0
          %v874 = vadd.f32 0.0, %v873
          %v875 = vpop.f32.mrb[0].mxu0
          %876 = vmatprep.mubr.bf16.mxu0 0
          %877 = vmatmul.mubr.bf16.gmra.mrb[0].mxu0 %v750
          %v878 = vpop.f32.mrb[0].mxu0
          %v879 = vadd.f32 0.0, %v878
          %v880 = vpop.f32.mrb[0].mxu0
          %v881 = vpop.f32.mrb[0].mxu0
          %v882 = vadd.f32 0.0, %v881
          %v883 = vpop.f32.mrb[0].mxu0
          %884 = vmatprep.mubr.bf16.mxu0 0
          %885 = vmatmul.mubr.bf16.gmra.mrb[0].mxu0 %v751
          %v886 = vpop.f32.mrb[0].mxu0
          %v887 = vadd.f32 0.0, %v886
          %v888 = vpop.f32.mrb[0].mxu0
          %v889 = vpop.f32.mrb[0].mxu0
          %v890 = vadd.f32 0.0, %v889
          %v891 = vpop.f32.mrb[0].mxu0
          %892 = vmatprep.mubr.bf16.mxu0 0
          %893 = vmatmul.mubr.bf16.gmra.mrb[0].mxu0 %v752
          %v894 = vpop.f32.mrb[0].mxu0
          %v895 = vadd.f32 0.0, %v894
          %v896 = vpop.f32.mrb[0].mxu0
          %v897 = vpop.f32.mrb[0].mxu0
          %v898 = vadd.f32 0.0, %v897
          %v899 = vpop.f32.mrb[0].mxu0
          %900 = vmatprep.mubr.bf16.mxu0 0
          %901 = vmatmul.mubr.bf16.gmra.mrb[0].mxu0 %v753
          %v902 = vpop.f32.mrb[0].mxu0
          %v903 = vadd.f32 0.0, %v902
          %v904 = vpop.f32.mrb[0].mxu0
          %v905 = vpop.f32.mrb[0].mxu0
          %v906 = vadd.f32 0.0, %v905
          %v907 = vpop.f32.mrb[0].mxu0
          %908 = vmatprep.mubr.bf16.mxu0 0
          %909 = vmatmul.mubr.bf16.gmra.mrb[0].mxu0 %v754
          %v910 = vpop.f32.mrb[0].mxu0
          %v911 = vadd.f32 0.0, %v910
          %v912 = vpop.f32.mrb[0].mxu0
          %v913 = vpop.f32.mrb[0].mxu0
          %v914 = vadd.f32 0.0, %v913
          %v915 = vpop.f32.mrb[0].mxu0
          %916 = vmatprep.mubr.bf16.mxu0 0
          %917 = vmatmul.mubr.bf16.gmra.mrb[0].mxu0 %v755
          %v918 = vpop.f32.mrb[0].mxu0
          %v919 = vadd.f32 0.0, %v918
          %v920 = vpop.f32.mrb[0].mxu0
          %v921 = vpop.f32.mrb[0].mxu0
          %v922 = vadd.f32 0.0, %v921
          %v923 = vpop.f32.mrb[0].mxu0
          %924 = vmatprep.mubr.bf16.mxu0 0
          %925 = vmatmul.mubr.bf16.gmra.mrb[0].mxu0 %v756
          %v926 = vpop.f32.mrb[0].mxu0
          %v927 = vadd.f32 0.0, %v926
          %v928 = vpop.f32.mrb[0].mxu0
          %v929 = vpop.f32.mrb[0].mxu0
          %v930 = vadd.f32 0.0, %v929
          %v931 = vpop.f32.mrb[0].mxu0
          %932 = vmatprep.mubr.bf16.mxu0 0
          %933 = vmatmul.mubr.bf16.gmra.mrb[0].mxu0 %v757
          %v934 = vpop.f32.mrb[0].mxu0
          %v935 = vadd.f32 0.0, %v934
          %v936 = vpop.f32.mrb[0].mxu0
          %v937 = vpop.f32.mrb[0].mxu0
          %v938 = vadd.f32 0.0, %v937
          %v939 = vpop.f32.mrb[0].mxu0
          %940 = vmatprep.mubr.bf16.mxu0 0
          %941 = vmatmul.mubr.bf16.gmra.mrb[0].mxu0 %v758
          %v942 = vpop.f32.mrb[0].mxu0
          %v943 = vadd.f32 0.0, %v942
          %v944 = vpop.f32.mrb[0].mxu0
          %v945 = vpop.f32.mrb[0].mxu0
          %v946 = vadd.f32 0.0, %v945
          %v947 = vpop.f32.mrb[0].mxu0
          %948 = vmatprep.mubr.bf16.mxu0 0
          %949 = vmatmul.mubr.bf16.gmra.mrb[0].mxu0 %v759
          %v950 = vpop.f32.mrb[0].mxu0
          %v951 = vadd.f32 0.0, %v950
          %v952 = vpop.f32.mrb[0].mxu0
          %v953 = vpop.f32.mrb[0].mxu0
          %v954 = vadd.f32 0.0, %v953
          %v955 = vpop.f32.mrb[0].mxu0
          %956 = vmatprep.mubr.bf16.mxu0 0
          %957 = vmatmul.mubr.bf16.gmra.mrb[0].mxu0 %v760
          %v958 = vpop.f32.mrb[0].mxu0
          %v959 = vadd.f32 0.0, %v958
          %v960 = vpop.f32.mrb[0].mxu0
          %v961 = vpop.f32.mrb[0].mxu0
          %v962 = vadd.f32 0.0, %v961
          %v963 = vpop.f32.mrb[0].mxu0
          %964 = vmatprep.mubr.bf16.mxu0 0
          %965 = vmatmul.mubr.bf16.gmra.mrb[0].mxu0 %v761
          %v966 = vpop.f32.mrb[0].mxu0
          %v967 = vadd.f32 0.0, %v966
          %v968 = vpop.f32.mrb[0].mxu0
          %v969 = vpop.f32.mrb[0].mxu0
          %v970 = vadd.f32 0.0, %v969
          %v971 = vpop.f32.mrb[0].mxu0
          %972 = vmatprep.mubr.bf16.mxu0 0
          %973 = vmatmul.mubr.bf16.gmra.mrb[0].mxu0 %v762
          %v974 = vpop.f32.mrb[0].mxu0
          %v975 = vadd.f32 0.0, %v974
          %v976 = vpop.f32.mrb[0].mxu0
          %v977 = vpop.f32.mrb[0].mxu0
          %v978 = vadd.f32 0.0, %v977
          %v979 = vpop.f32.mrb[0].mxu0
          %980 = vmatprep.mubr.bf16.mxu0 0
          %981 = vmatmul.mubr.bf16.gmra.mrb[0].mxu0 %v763
          %v982 = vpop.f32.mrb[0].mxu0
          %v983 = vadd.f32 0.0, %v982
          %v984 = vpop.f32.mrb[0].mxu0
          %v985 = vpop.f32.mrb[0].mxu0
          %v986 = vadd.f32 0.0, %v985
          %v987 = vpop.f32.mrb[0].mxu0
          %988 = vdwg.mxu0
          %v989 = vpack.c.bf16 %v866, %v863
          %v990 = vpack.c.bf16 %v874, %v871
          %v991 = vpack.c.bf16 %v882, %v879
          %v992 = vpack.c.bf16 %v890, %v887
          %v993 = vpack.c.bf16 %v898, %v895
          %v994 = vpack.c.bf16 %v906, %v903
          %v995 = vpack.c.bf16 %v914, %v911
          %v996 = vpack.c.bf16 %v922, %v919
          %v997 = vpack.c.bf16 %v930, %v927
          %v998 = vpack.c.bf16 %v938, %v935
          %v999 = vpack.c.bf16 %v946, %v943
          %v1000 = vpack.c.bf16 %v954, %v951
          %v1001 = vpack.c.bf16 %v962, %v959
          %v1002 = vpack.c.bf16 %v970, %v967
          %v1003 = vpack.c.bf16 %v978, %v975
          %v1004 = vpack.c.bf16 %v986, %v983
          %s1005 = sshra.s32 %s231, 4
          %s1006 = sand.u32 %s231, 15
          %s1007 = smul.addr %s1005, 8
          %s1008 = scalar_lea.vmem [#allocation3], %s1007
          %1009 = vst [vmem:[%s1008] sm:$0xff] %v989
          %1010 = vst [vmem:[%s1008 + $0x8] sm:$0xff] %v990
          %1011 = vst [vmem:[%s1008 + $0x10] sm:$0xff] %v991
          %1012 = vst [vmem:[%s1008 + $0x18] sm:$0xff] %v992
          %1013 = vst [vmem:[%s1008 + $0x20] sm:$0xff] %v993
          %1014 = vst [vmem:[%s1008 + $0x28] sm:$0xff] %v994
          %1015 = vst [vmem:[%s1008 + $0x30] sm:$0xff] %v995
          %1016 = vst [vmem:[%s1008 + $0x38] sm:$0xff] %v996
          %1017 = vst [vmem:[%s1008 + $0x40] sm:$0xff] %v997
          %1018 = vst [vmem:[%s1008 + $0x48] sm:$0xff] %v998
          %1019 = vst [vmem:[%s1008 + $0x50] sm:$0xff] %v999
          %1020 = vst [vmem:[%s1008 + $0x58] sm:$0xff] %v1000
          %1021 = vst [vmem:[%s1008 + $0x60] sm:$0xff] %v1001
          %1022 = vst [vmem:[%s1008 + $0x68] sm:$0xff] %v1002
          %1023 = vst [vmem:[%s1008 + $0x70] sm:$0xff] %v1003
          %1024 = vst [vmem:[%s1008 + $0x78] sm:$0xff] %v1004
        $region78: #{graph_encoder_forward.1} parent=73 // pred_fallthru
          _
        // Predicated region
        $region79: #{graph_encoder_forward.1} parent=73 // pred_check
          %p1025 = pneg %p232
        $region80: #{graph_encoder_forward.1} parent=73 // pred_check_branch
          %1027 = sbr.rel (%p1025) target = $region82
        $region81: #{graph_encoder_forward.1} parent=73 // pred_region
          %1028 = vst [vmem:[%s226] sm:$0xff] %v586
          %1029 = vst [vmem:[%s226 + $0x8] sm:$0xff] %v589
          %1030 = vst [vmem:[%s226 + $0x10] sm:$0xff] %v594
          %1031 = vst [vmem:[%s226 + $0x18] sm:$0xff] %v597
          %1032 = vst [vmem:[%s226 + $0x20] sm:$0xff] %v602
          %1033 = vst [vmem:[%s226 + $0x28] sm:$0xff] %v605
          %1034 = vst [vmem:[%s226 + $0x30] sm:$0xff] %v610
          %1035 = vst [vmem:[%s226 + $0x38] sm:$0xff] %v613
          %1036 = vst [vmem:[%s226 + $0x40] sm:$0xff] %v618
          %1037 = vst [vmem:[%s226 + $0x48] sm:$0xff] %v621
          %1038 = vst [vmem:[%s226 + $0x50] sm:$0xff] %v626
          %1039 = vst [vmem:[%s226 + $0x58] sm:$0xff] %v629
          %1040 = vst [vmem:[%s226 + $0x60] sm:$0xff] %v634
          %1041 = vst [vmem:[%s226 + $0x68] sm:$0xff] %v637
          %1042 = vst [vmem:[%s226 + $0x70] sm:$0xff] %v642
          %1043 = vst [vmem:[%s226 + $0x78] sm:$0xff] %v645
          %1044 = vst [vmem:[%s226 + $0x80] sm:$0xff] %v650
          %1045 = vst [vmem:[%s226 + $0x88] sm:$0xff] %v653
          %1046 = vst [vmem:[%s226 + $0x90] sm:$0xff] %v658
          %1047 = vst [vmem:[%s226 + $0x98] sm:$0xff] %v661
          %1048 = vst [vmem:[%s226 + $0xa0] sm:$0xff] %v666
          %1049 = vst [vmem:[%s226 + $0xa8] sm:$0xff] %v669
          %1050 = vst [vmem:[%s226 + $0xb0] sm:$0xff] %v674
          %1051 = vst [vmem:[%s226 + $0xb8] sm:$0xff] %v677
          %1052 = vst [vmem:[%s226 + $0xc0] sm:$0xff] %v682
          %1053 = vst [vmem:[%s226 + $0xc8] sm:$0xff] %v685
          %1054 = vst [vmem:[%s226 + $0xd0] sm:$0xff] %v690
          %1055 = vst [vmem:[%s226 + $0xd8] sm:$0xff] %v693
          %1056 = vst [vmem:[%s226 + $0xe0] sm:$0xff] %v698
          %1057 = vst [vmem:[%s226 + $0xe8] sm:$0xff] %v701
          %1058 = vst [vmem:[%s226 + $0xf0] sm:$0xff] %v706
          %1059 = vst [vmem:[%s226 + $0xf8] sm:$0xff] %v709
        $region82: #{graph_encoder_forward.1} parent=73 // pred_fallthru
          _
      $region74: #{graph_encoder_forward.1} parent=31 // pred_fallthru
        _
      %p1060 = scmp.eq.s32.totalorder %s363, 1
      // Predicated region
      $region83: #{graph_encoder_forward.1} parent=31 // pred_check
        %p1061 = pneg %p1060
      $region84: #{graph_encoder_forward.1} parent=31 // pred_check_branch
        %1063 = sbr.rel (%p1061) target = $region86
      $region85: #{graph_encoder_forward.1} parent=31 // pred_region
        %v1064 = vld [vmem:[#allocation3] sm:$0xff]
        %v1065 = vld [vmem:[#allocation3 + $0x8] sm:$0xff]
        %v1066 = vld [vmem:[#allocation3 + $0x10] sm:$0xff]
        %v1067 = vld [vmem:[#allocation3 + $0x18] sm:$0xff]
        %v1068 = vld [vmem:[#allocation3 + $0x20] sm:$0xff]
        %v1069 = vld [vmem:[#allocation3 + $0x28] sm:$0xff]
        %v1070 = vld [vmem:[#allocation3 + $0x30] sm:$0xff]
        %v1071 = vld [vmem:[#allocation3 + $0x38] sm:$0xff]
        %v1072 = vld [vmem:[#allocation3 + $0x40] sm:$0xff]
        %v1073 = vld [vmem:[#allocation3 + $0x48] sm:$0xff]
        %v1074 = vld [vmem:[#allocation3 + $0x50] sm:$0xff]
        %v1075 = vld [vmem:[#allocation3 + $0x58] sm:$0xff]
        %v1076 = vld [vmem:[#allocation3 + $0x60] sm:$0xff]
        %v1077 = vld [vmem:[#allocation3 + $0x68] sm:$0xff]
        %v1078 = vld [vmem:[#allocation3 + $0x70] sm:$0xff]
        %v1079 = vld [vmem:[#allocation3 + $0x78] sm:$0xff]
        %v1080 = vld [vmem:[%s219] sm:$0x1]
        %v1082 = vlaneseq
        %v1083 = vshrl.u32 %v1082, 7
        %v1084 = vsub.s32 0, %v1083
        %v1085 = vrot.slane %v1080, %v1084
        %v1119 = vunpack.c.l.b16 %v320
        %v1120 = vunpack.c.h.b16 %v320
        %v1121 = vunpack.c.l.b16 %v321
        %v1122 = vunpack.c.h.b16 %v321
        %v1123 = vunpack.c.l.b16 %v322
        %v1124 = vunpack.c.h.b16 %v322
        %v1125 = vunpack.c.l.b16 %v323
        %v1126 = vunpack.c.h.b16 %v323
        %v1127 = vunpack.c.l.b16 %v324
        %v1128 = vunpack.c.h.b16 %v324
        %v1129 = vunpack.c.l.b16 %v325
        %v1130 = vunpack.c.h.b16 %v325
        %v1131 = vunpack.c.l.b16 %v326
        %v1132 = vunpack.c.h.b16 %v326
        %v1133 = vunpack.c.l.b16 %v327
        %v1134 = vunpack.c.h.b16 %v327
        %v1135 = vunpack.c.l.b16 %v328
        %v1136 = vunpack.c.h.b16 %v328
        %v1137 = vunpack.c.l.b16 %v329
        %v1138 = vunpack.c.h.b16 %v329
        %v1139 = vunpack.c.l.b16 %v330
        %v1140 = vunpack.c.h.b16 %v330
        %v1141 = vunpack.c.l.b16 %v331
        %v1142 = vunpack.c.h.b16 %v331
        %v1143 = vunpack.c.l.b16 %v332
        %v1144 = vunpack.c.h.b16 %v332
        %v1145 = vunpack.c.l.b16 %v333
        %v1146 = vunpack.c.h.b16 %v333
        %v1147 = vunpack.c.l.b16 %v334
        %v1148 = vunpack.c.h.b16 %v334
        %v1149 = vunpack.c.l.b16 %v335
        %v1150 = vunpack.c.h.b16 %v335
        %v1151 = vunpack.c.l.b16 %v336
        %v1152 = vunpack.c.h.b16 %v336
        %v1153 = vunpack.c.l.b16 %v337
        %v1154 = vunpack.c.h.b16 %v337
        %v1155 = vunpack.c.l.b16 %v338
        %v1156 = vunpack.c.h.b16 %v338
        %v1157 = vunpack.c.l.b16 %v339
        %v1158 = vunpack.c.h.b16 %v339
        %v1159 = vunpack.c.l.b16 %v340
        %v1160 = vunpack.c.h.b16 %v340
        %v1161 = vunpack.c.l.b16 %v341
        %v1162 = vunpack.c.h.b16 %v341
        %v1163 = vunpack.c.l.b16 %v342
        %v1164 = vunpack.c.h.b16 %v342
        %v1165 = vunpack.c.l.b16 %v343
        %v1166 = vunpack.c.h.b16 %v343
        %v1167 = vunpack.c.l.b16 %v344
        %v1168 = vunpack.c.h.b16 %v344
        %v1169 = vunpack.c.l.b16 %v345
        %v1170 = vunpack.c.h.b16 %v345
        %v1171 = vunpack.c.l.b16 %v346
        %v1172 = vunpack.c.h.b16 %v346
        %v1173 = vunpack.c.l.b16 %v347
        %v1174 = vunpack.c.h.b16 %v347
        %v1175 = vunpack.c.l.b16 %v348
        %v1176 = vunpack.c.h.b16 %v348
        %v1177 = vunpack.c.l.b16 %v349
        %v1178 = vunpack.c.h.b16 %v349
        %v1179 = vunpack.c.l.b16 %v350
        %v1180 = vunpack.c.h.b16 %v350
        %v1181 = vunpack.c.l.b16 %v351
        %v1182 = vunpack.c.h.b16 %v351
        %v1183 = vpack.c.b16 %v1121, %v1119
        %v1184 = vpack.c.b16 %v1122, %v1120
        %v1185 = vpack.c.b16 %v1125, %v1123
        %v1186 = vpack.c.b16 %v1126, %v1124
        %v1187 = vpack.c.b16 %v1129, %v1127
        %v1188 = vpack.c.b16 %v1130, %v1128
        %v1189 = vpack.c.b16 %v1133, %v1131
        %v1190 = vpack.c.b16 %v1134, %v1132
        %v1191 = vpack.c.b16 %v1137, %v1135
        %v1192 = vpack.c.b16 %v1138, %v1136
        %v1193 = vpack.c.b16 %v1141, %v1139
        %v1194 = vpack.c.b16 %v1142, %v1140
        %v1195 = vpack.c.b16 %v1145, %v1143
        %v1196 = vpack.c.b16 %v1146, %v1144
        %v1197 = vpack.c.b16 %v1149, %v1147
        %v1198 = vpack.c.b16 %v1150, %v1148
        %v1199 = vpack.c.b16 %v1153, %v1151
        %v1200 = vpack.c.b16 %v1154, %v1152
        %v1201 = vpack.c.b16 %v1157, %v1155
        %v1202 = vpack.c.b16 %v1158, %v1156
        %v1203 = vpack.c.b16 %v1161, %v1159
        %v1204 = vpack.c.b16 %v1162, %v1160
        %v1205 = vpack.c.b16 %v1165, %v1163
        %v1206 = vpack.c.b16 %v1166, %v1164
        %v1207 = vpack.c.b16 %v1169, %v1167
        %v1208 = vpack.c.b16 %v1170, %v1168
        %v1209 = vpack.c.b16 %v1173, %v1171
        %v1210 = vpack.c.b16 %v1174, %v1172
        %v1211 = vpack.c.b16 %v1177, %v1175
        %v1212 = vpack.c.b16 %v1178, %v1176
        %v1213 = vpack.c.b16 %v1181, %v1179
        %v1214 = vpack.c.b16 %v1182, %v1180
        %1247 = vmatprep.subr.bf16.mxu0 0
        %1248 = vmatpush1.bf16.msra.mxu0 %v1064
        %1249 = vmatprep.subr.bf16.mxu0 0
        %1250 = vmatpush1.bf16.msra.mxu0 %v1065
        %1251 = vmatprep.subr.bf16.mxu0 0
        %1252 = vmatpush1.bf16.msra.mxu0 %v1066
        %1253 = vmatprep.subr.bf16.mxu0 0
        %1254 = vmatpush1.bf16.msra.mxu0 %v1067
        %1255 = vmatprep.subr.bf16.mxu0 0
        %1256 = vmatpush1.bf16.msra.mxu0 %v1068
        %1257 = vmatprep.subr.bf16.mxu0 0
        %1258 = vmatpush1.bf16.msra.mxu0 %v1069
        %1259 = vmatprep.subr.bf16.mxu0 0
        %1260 = vmatpush1.bf16.msra.mxu0 %v1070
        %1261 = vmatprep.subr.bf16.mxu0 0
        %1262 = vmatpush1.bf16.msra.mxu0 %v1071
        %1263 = vmatprep.subr.bf16.mxu0 0
        %1264 = vmatpush1.bf16.msra.mxu0 %v1072
        %1265 = vmatprep.subr.bf16.mxu0 0
        %1266 = vmatpush1.bf16.msra.mxu0 %v1073
        %1267 = vmatprep.subr.bf16.mxu0 0
        %1268 = vmatpush1.bf16.msra.mxu0 %v1074
        %1269 = vmatprep.subr.bf16.mxu0 0
        %1270 = vmatpush1.bf16.msra.mxu0 %v1075
        %1271 = vmatprep.subr.bf16.mxu0 0
        %1272 = vmatpush1.bf16.msra.mxu0 %v1076
        %1273 = vmatprep.subr.bf16.mxu0 0
        %1274 = vmatpush1.bf16.msra.mxu0 %v1077
        %1275 = vmatprep.subr.bf16.mxu0 0
        %1276 = vmatpush1.bf16.msra.mxu0 %v1078
        %1277 = vmatprep.subr.bf16.mxu0 0
        %1278 = vmatpush1.bf16.msra.mxu0 %v1079
        %1279 = vmatprep.mubr.bf16.mxu0 %v1184
        %1280 = vmatmul.mubr.bf16.gmra.mrb[0].mxu0 %v1183
        %v1281 = vpop.f32.mrb[0].mxu0
        %v1282 = vadd.f32 %v1085, %v1281
        %v1283 = vpop.f32.mrb[0].mxu0
        %v1284 = vpop.f32.mrb[0].mxu0
        %v1285 = vadd.f32 %v1085, %v1284
        %v1286 = vpop.f32.mrb[0].mxu0
        %1287 = vmatprep.mubr.bf16.mxu0 %v1186
        %1288 = vmatmul.mubr.bf16.gmra.mrb[0].mxu0 %v1185
        %v1289 = vpop.f32.mrb[0].mxu0
        %v1290 = vadd.f32 %v1085, %v1289
        %v1291 = vpop.f32.mrb[0].mxu0
        %v1292 = vpop.f32.mrb[0].mxu0
        %v1293 = vadd.f32 %v1085, %v1292
        %v1294 = vpop.f32.mrb[0].mxu0
        %1295 = vmatprep.mubr.bf16.mxu0 %v1188
        %1296 = vmatmul.mubr.bf16.gmra.mrb[0].mxu0 %v1187
        %v1297 = vpop.f32.mrb[0].mxu0
        %v1298 = vadd.f32 %v1085, %v1297
        %v1299 = vpop.f32.mrb[0].mxu0
        %v1300 = vpop.f32.mrb[0].mxu0
        %v1301 = vadd.f32 %v1085, %v1300
        %v1302 = vpop.f32.mrb[0].mxu0
        %1303 = vmatprep.mubr.bf16.mxu0 %v1190
        %1304 = vmatmul.mubr.bf16.gmra.mrb[0].mxu0 %v1189
        %v1305 = vpop.f32.mrb[0].mxu0
        %v1306 = vadd.f32 %v1085, %v1305
        %v1307 = vpop.f32.mrb[0].mxu0
        %v1308 = vpop.f32.mrb[0].mxu0
        %v1309 = vadd.f32 %v1085, %v1308
        %v1310 = vpop.f32.mrb[0].mxu0
        %1311 = vmatprep.mubr.bf16.mxu0 %v1192
        %1312 = vmatmul.mubr.bf16.gmra.mrb[0].mxu0 %v1191
        %v1313 = vpop.f32.mrb[0].mxu0
        %v1314 = vadd.f32 %v1085, %v1313
        %v1315 = vpop.f32.mrb[0].mxu0
        %v1316 = vpop.f32.mrb[0].mxu0
        %v1317 = vadd.f32 %v1085, %v1316
        %v1318 = vpop.f32.mrb[0].mxu0
        %1319 = vmatprep.mubr.bf16.mxu0 %v1194
        %1320 = vmatmul.mubr.bf16.gmra.mrb[0].mxu0 %v1193
        %v1321 = vpop.f32.mrb[0].mxu0
        %v1322 = vadd.f32 %v1085, %v1321
        %v1323 = vpop.f32.mrb[0].mxu0
        %v1324 = vpop.f32.mrb[0].mxu0
        %v1325 = vadd.f32 %v1085, %v1324
        %v1326 = vpop.f32.mrb[0].mxu0
        %1327 = vmatprep.mubr.bf16.mxu0 %v1196
        %1328 = vmatmul.mubr.bf16.gmra.mrb[0].mxu0 %v1195
        %v1329 = vpop.f32.mrb[0].mxu0
        %v1330 = vadd.f32 %v1085, %v1329
        %v1331 = vpop.f32.mrb[0].mxu0
        %v1332 = vpop.f32.mrb[0].mxu0
        %v1333 = vadd.f32 %v1085, %v1332
        %v1334 = vpop.f32.mrb[0].mxu0
        %1335 = vmatprep.mubr.bf16.mxu0 %v1198
        %1336 = vmatmul.mubr.bf16.gmra.mrb[0].mxu0 %v1197
        %v1337 = vpop.f32.mrb[0].mxu0
        %v1338 = vadd.f32 %v1085, %v1337
        %v1339 = vpop.f32.mrb[0].mxu0
        %v1340 = vpop.f32.mrb[0].mxu0
        %v1341 = vadd.f32 %v1085, %v1340
        %v1342 = vpop.f32.mrb[0].mxu0
        %1343 = vmatprep.mubr.bf16.mxu0 %v1200
        %1344 = vmatmul.mubr.bf16.gmra.mrb[0].mxu0 %v1199
        %v1345 = vpop.f32.mrb[0].mxu0
        %v1346 = vadd.f32 %v1085, %v1345
        %v1347 = vpop.f32.mrb[0].mxu0
        %v1348 = vpop.f32.mrb[0].mxu0
        %v1349 = vadd.f32 %v1085, %v1348
        %v1350 = vpop.f32.mrb[0].mxu0
        %1351 = vmatprep.mubr.bf16.mxu0 %v1202
        %1352 = vmatmul.mubr.bf16.gmra.mrb[0].mxu0 %v1201
        %v1353 = vpop.f32.mrb[0].mxu0
        %v1354 = vadd.f32 %v1085, %v1353
        %v1355 = vpop.f32.mrb[0].mxu0
        %v1356 = vpop.f32.mrb[0].mxu0
        %v1357 = vadd.f32 %v1085, %v1356
        %v1358 = vpop.f32.mrb[0].mxu0
        %1359 = vmatprep.mubr.bf16.mxu0 %v1204
        %1360 = vmatmul.mubr.bf16.gmra.mrb[0].mxu0 %v1203
        %v1361 = vpop.f32.mrb[0].mxu0
        %v1362 = vadd.f32 %v1085, %v1361
        %v1363 = vpop.f32.mrb[0].mxu0
        %v1364 = vpop.f32.mrb[0].mxu0
        %v1365 = vadd.f32 %v1085, %v1364
        %v1366 = vpop.f32.mrb[0].mxu0
        %1367 = vmatprep.mubr.bf16.mxu0 %v1206
        %1368 = vmatmul.mubr.bf16.gmra.mrb[0].mxu0 %v1205
        %v1369 = vpop.f32.mrb[0].mxu0
        %v1370 = vadd.f32 %v1085, %v1369
        %v1371 = vpop.f32.mrb[0].mxu0
        %v1372 = vpop.f32.mrb[0].mxu0
        %v1373 = vadd.f32 %v1085, %v1372
        %v1374 = vpop.f32.mrb[0].mxu0
        %1375 = vmatprep.mubr.bf16.mxu0 %v1208
        %1376 = vmatmul.mubr.bf16.gmra.mrb[0].mxu0 %v1207
        %v1377 = vpop.f32.mrb[0].mxu0
        %v1378 = vadd.f32 %v1085, %v1377
        %v1379 = vpop.f32.mrb[0].mxu0
        %v1380 = vpop.f32.mrb[0].mxu0
        %v1381 = vadd.f32 %v1085, %v1380
        %v1382 = vpop.f32.mrb[0].mxu0
        %1383 = vmatprep.mubr.bf16.mxu0 %v1210
        %1384 = vmatmul.mubr.bf16.gmra.mrb[0].mxu0 %v1209
        %v1385 = vpop.f32.mrb[0].mxu0
        %v1386 = vadd.f32 %v1085, %v1385
        %v1387 = vpop.f32.mrb[0].mxu0
        %v1388 = vpop.f32.mrb[0].mxu0
        %v1389 = vadd.f32 %v1085, %v1388
        %v1390 = vpop.f32.mrb[0].mxu0
        %1391 = vmatprep.mubr.bf16.mxu0 %v1212
        %1392 = vmatmul.mubr.bf16.gmra.mrb[0].mxu0 %v1211
        %v1393 = vpop.f32.mrb[0].mxu0
        %v1394 = vadd.f32 %v1085, %v1393
        %v1395 = vpop.f32.mrb[0].mxu0
        %v1396 = vpop.f32.mrb[0].mxu0
        %v1397 = vadd.f32 %v1085, %v1396
        %v1398 = vpop.f32.mrb[0].mxu0
        %1399 = vmatprep.mubr.bf16.mxu0 %v1214
        %1400 = vmatmul.mubr.bf16.gmra.mrb[0].mxu0 %v1213
        %v1401 = vpop.f32.mrb[0].mxu0
        %v1402 = vadd.f32 %v1085, %v1401
        %v1403 = vpop.f32.mrb[0].mxu0
        %v1404 = vpop.f32.mrb[0].mxu0
        %v1405 = vadd.f32 %v1085, %v1404
        %v1406 = vpop.f32.mrb[0].mxu0
        %1407 = vdwg.mxu0
        %p1408 = scmp.ne.s32.totalorder %s19, 1
        // Predicated region
        $region87: #{graph_encoder_forward.1} parent=85 // pred_check
          %p1409 = pneg %p1408
        $region88: #{graph_encoder_forward.1} parent=85 // pred_check_branch
          %1411 = sbr.rel (%p1409) target = $region90
        $region89: #{graph_encoder_forward.1} parent=85 // pred_region
          %v1412 = vmax.f32 %v1282, 0.0
          %v1413 = vmax.f32 %v1285, 0.0
          %v1414 = vmax.f32 %v1290, 0.0
          %v1415 = vmax.f32 %v1293, 0.0
          %v1416 = vmax.f32 %v1298, 0.0
          %v1417 = vmax.f32 %v1301, 0.0
          %v1418 = vmax.f32 %v1306, 0.0
          %v1419 = vmax.f32 %v1309, 0.0
          %v1420 = vmax.f32 %v1314, 0.0
          %v1421 = vmax.f32 %v1317, 0.0
          %v1422 = vmax.f32 %v1322, 0.0
          %v1423 = vmax.f32 %v1325, 0.0
          %v1424 = vmax.f32 %v1330, 0.0
          %v1425 = vmax.f32 %v1333, 0.0
          %v1426 = vmax.f32 %v1338, 0.0
          %v1427 = vmax.f32 %v1341, 0.0
          %v1428 = vmax.f32 %v1346, 0.0
          %v1429 = vmax.f32 %v1349, 0.0
          %v1430 = vmax.f32 %v1354, 0.0
          %v1431 = vmax.f32 %v1357, 0.0
          %v1432 = vmax.f32 %v1362, 0.0
          %v1433 = vmax.f32 %v1365, 0.0
          %v1434 = vmax.f32 %v1370, 0.0
          %v1435 = vmax.f32 %v1373, 0.0
          %v1436 = vmax.f32 %v1378, 0.0
          %v1437 = vmax.f32 %v1381, 0.0
          %v1438 = vmax.f32 %v1386, 0.0
          %v1439 = vmax.f32 %v1389, 0.0
          %v1440 = vmax.f32 %v1394, 0.0
          %v1441 = vmax.f32 %v1397, 0.0
          %v1442 = vmax.f32 %v1402, 0.0
          %v1443 = vmax.f32 %v1405, 0.0
          %v1444 = vpack.c.bf16 %v1413, %v1412
          %v1445 = vpack.c.bf16 %v1415, %v1414
          %v1446 = vpack.c.bf16 %v1417, %v1416
          %v1447 = vpack.c.bf16 %v1419, %v1418
          %v1448 = vpack.c.bf16 %v1421, %v1420
          %v1449 = vpack.c.bf16 %v1423, %v1422
          %v1450 = vpack.c.bf16 %v1425, %v1424
          %v1451 = vpack.c.bf16 %v1427, %v1426
          %v1452 = vpack.c.bf16 %v1429, %v1428
          %v1453 = vpack.c.bf16 %v1431, %v1430
          %v1454 = vpack.c.bf16 %v1433, %v1432
          %v1455 = vpack.c.bf16 %v1435, %v1434
          %v1456 = vpack.c.bf16 %v1437, %v1436
          %v1457 = vpack.c.bf16 %v1439, %v1438
          %v1458 = vpack.c.bf16 %v1441, %v1440
          %v1459 = vpack.c.bf16 %v1443, %v1442
          %v1460 = vld [vmem:[%s213] sm:$0xf]
          %v1461 = vld [vmem:[%s213 + $0x4] sm:$0xf]
          %v1462 = vld [vmem:[%s213 + $0x8] sm:$0xf]
          %v1463 = vld [vmem:[%s213 + $0xc] sm:$0xf]
          %v1464 = vld [vmem:[%s213 + $0x10] sm:$0xf]
          %v1465 = vld [vmem:[%s213 + $0x14] sm:$0xf]
          %v1466 = vld [vmem:[%s213 + $0x18] sm:$0xf]
          %v1467 = vld [vmem:[%s213 + $0x1c] sm:$0xf]
          %v1468 = vld [vmem:[%s213 + $0x20] sm:$0xf]
          %v1469 = vld [vmem:[%s213 + $0x24] sm:$0xf]
          %v1470 = vld [vmem:[%s213 + $0x28] sm:$0xf]
          %v1471 = vld [vmem:[%s213 + $0x2c] sm:$0xf]
          %v1472 = vld [vmem:[%s213 + $0x30] sm:$0xf]
          %v1473 = vld [vmem:[%s213 + $0x34] sm:$0xf]
          %v1474 = vld [vmem:[%s213 + $0x38] sm:$0xf]
          %v1475 = vld [vmem:[%s213 + $0x3c] sm:$0xf]
          %v1492 = vunpack.c.l.b16 %v1460
          %v1493 = vunpack.c.l.b16 %v1461
          %v1494 = vunpack.c.l.b16 %v1462
          %v1495 = vunpack.c.l.b16 %v1463
          %v1496 = vunpack.c.l.b16 %v1464
          %v1497 = vunpack.c.l.b16 %v1465
          %v1498 = vunpack.c.l.b16 %v1466
          %v1499 = vunpack.c.l.b16 %v1467
          %v1500 = vunpack.c.l.b16 %v1468
          %v1501 = vunpack.c.l.b16 %v1469
          %v1502 = vunpack.c.l.b16 %v1470
          %v1503 = vunpack.c.l.b16 %v1471
          %v1504 = vunpack.c.l.b16 %v1472
          %v1505 = vunpack.c.l.b16 %v1473
          %v1506 = vunpack.c.l.b16 %v1474
          %v1507 = vunpack.c.l.b16 %v1475
          %v1508 = vpack.c.b16 %v1493, %v1492
          %v1509 = vpack.c.b16 %v1495, %v1494
          %v1510 = vpack.c.b16 %v1497, %v1496
          %v1511 = vpack.c.b16 %v1499, %v1498
          %v1512 = vpack.c.b16 %v1501, %v1500
          %v1513 = vpack.c.b16 %v1503, %v1502
          %v1514 = vpack.c.b16 %v1505, %v1504
          %v1515 = vpack.c.b16 %v1507, %v1506
          %1524 = vmatprep.subr.bf16.mxu0 0
          %1525 = vmatpush1.bf16.msra.mxu0 %v1508
          %1526 = vmatprep.subr.bf16.mxu0 0
          %1527 = vmatpush1.bf16.msra.mxu0 %v1509
          %1528 = vmatprep.subr.bf16.mxu0 0
          %1529 = vmatpush1.bf16.msra.mxu0 %v1510
          %1530 = vmatprep.subr.bf16.mxu0 0
          %1531 = vmatpush1.bf16.msra.mxu0 %v1511
          %1532 = vmatprep.subr.bf16.mxu0 0
          %1533 = vmatpush1.bf16.msra.mxu0 %v1512
          %1534 = vmatprep.subr.bf16.mxu0 0
          %1535 = vmatpush1.bf16.msra.mxu0 %v1513
          %1536 = vmatprep.subr.bf16.mxu0 0
          %1537 = vmatpush1.bf16.msra.mxu0 %v1514
          %1538 = vmatprep.subr.bf16.mxu0 0
          %1539 = vmatpush1.bf16.msra.mxu0 %v1515
          %1540 = vmatprep.subr.bf16.mxu0 0
          %1541 = vmatpush1.bf16.msra.mxu0 0
          %1542 = vmatprep.subr.bf16.mxu0 0
          %1543 = vmatpush1.bf16.msra.mxu0 0
          %1544 = vmatprep.subr.bf16.mxu0 0
          %1545 = vmatpush1.bf16.msra.mxu0 0
          %1546 = vmatprep.subr.bf16.mxu0 0
          %1547 = vmatpush1.bf16.msra.mxu0 0
          %1548 = vmatprep.subr.bf16.mxu0 0
          %1549 = vmatpush1.bf16.msra.mxu0 0
          %1550 = vmatprep.subr.bf16.mxu0 0
          %1551 = vmatpush1.bf16.msra.mxu0 0
          %1552 = vmatprep.subr.bf16.mxu0 0
          %1553 = vmatpush1.bf16.msra.mxu0 0
          %1554 = vmatprep.subr.bf16.mxu0 0
          %1555 = vmatpush1.bf16.msra.mxu0 0
          %1556 = vmatprep.mubr.bf16.mxu0 0
          %1557 = vmatmul.mubr.bf16.gmra.mrb[0].mxu0 %v1444
          %v1558 = vpop.f32.mrb[0].mxu0
          %v1559 = vadd.f32 0.0, %v1558
          %v1560 = vpop.f32.mrb[0].mxu0
          %v1561 = vpop.f32.mrb[0].mxu0
          %v1562 = vadd.f32 0.0, %v1561
          %v1563 = vpop.f32.mrb[0].mxu0
          %1564 = vmatprep.mubr.bf16.mxu0 0
          %1565 = vmatmul.mubr.bf16.gmra.mrb[0].mxu0 %v1445
          %v1566 = vpop.f32.mrb[0].mxu0
          %v1567 = vadd.f32 0.0, %v1566
          %v1568 = vpop.f32.mrb[0].mxu0
          %v1569 = vpop.f32.mrb[0].mxu0
          %v1570 = vadd.f32 0.0, %v1569
          %v1571 = vpop.f32.mrb[0].mxu0
          %1572 = vmatprep.mubr.bf16.mxu0 0
          %1573 = vmatmul.mubr.bf16.gmra.mrb[0].mxu0 %v1446
          %v1574 = vpop.f32.mrb[0].mxu0
          %v1575 = vadd.f32 0.0, %v1574
          %v1576 = vpop.f32.mrb[0].mxu0
          %v1577 = vpop.f32.mrb[0].mxu0
          %v1578 = vadd.f32 0.0, %v1577
          %v1579 = vpop.f32.mrb[0].mxu0
          %1580 = vmatprep.mubr.bf16.mxu0 0
          %1581 = vmatmul.mubr.bf16.gmra.mrb[0].mxu0 %v1447
          %v1582 = vpop.f32.mrb[0].mxu0
          %v1583 = vadd.f32 0.0, %v1582
          %v1584 = vpop.f32.mrb[0].mxu0
          %v1585 = vpop.f32.mrb[0].mxu0
          %v1586 = vadd.f32 0.0, %v1585
          %v1587 = vpop.f32.mrb[0].mxu0
          %1588 = vmatprep.mubr.bf16.mxu0 0
          %1589 = vmatmul.mubr.bf16.gmra.mrb[0].mxu0 %v1448
          %v1590 = vpop.f32.mrb[0].mxu0
          %v1591 = vadd.f32 0.0, %v1590
          %v1592 = vpop.f32.mrb[0].mxu0
          %v1593 = vpop.f32.mrb[0].mxu0
          %v1594 = vadd.f32 0.0, %v1593
          %v1595 = vpop.f32.mrb[0].mxu0
          %1596 = vmatprep.mubr.bf16.mxu0 0
          %1597 = vmatmul.mubr.bf16.gmra.mrb[0].mxu0 %v1449
          %v1598 = vpop.f32.mrb[0].mxu0
          %v1599 = vadd.f32 0.0, %v1598
          %v1600 = vpop.f32.mrb[0].mxu0
          %v1601 = vpop.f32.mrb[0].mxu0
          %v1602 = vadd.f32 0.0, %v1601
          %v1603 = vpop.f32.mrb[0].mxu0
          %1604 = vmatprep.mubr.bf16.mxu0 0
          %1605 = vmatmul.mubr.bf16.gmra.mrb[0].mxu0 %v1450
          %v1606 = vpop.f32.mrb[0].mxu0
          %v1607 = vadd.f32 0.0, %v1606
          %v1608 = vpop.f32.mrb[0].mxu0
          %v1609 = vpop.f32.mrb[0].mxu0
          %v1610 = vadd.f32 0.0, %v1609
          %v1611 = vpop.f32.mrb[0].mxu0
          %1612 = vmatprep.mubr.bf16.mxu0 0
          %1613 = vmatmul.mubr.bf16.gmra.mrb[0].mxu0 %v1451
          %v1614 = vpop.f32.mrb[0].mxu0
          %v1615 = vadd.f32 0.0, %v1614
          %v1616 = vpop.f32.mrb[0].mxu0
          %v1617 = vpop.f32.mrb[0].mxu0
          %v1618 = vadd.f32 0.0, %v1617
          %v1619 = vpop.f32.mrb[0].mxu0
          %1620 = vmatprep.mubr.bf16.mxu0 0
          %1621 = vmatmul.mubr.bf16.gmra.mrb[0].mxu0 %v1452
          %v1622 = vpop.f32.mrb[0].mxu0
          %v1623 = vadd.f32 0.0, %v1622
          %v1624 = vpop.f32.mrb[0].mxu0
          %v1625 = vpop.f32.mrb[0].mxu0
          %v1626 = vadd.f32 0.0, %v1625
          %v1627 = vpop.f32.mrb[0].mxu0
          %1628 = vmatprep.mubr.bf16.mxu0 0
          %1629 = vmatmul.mubr.bf16.gmra.mrb[0].mxu0 %v1453
          %v1630 = vpop.f32.mrb[0].mxu0
          %v1631 = vadd.f32 0.0, %v1630
          %v1632 = vpop.f32.mrb[0].mxu0
          %v1633 = vpop.f32.mrb[0].mxu0
          %v1634 = vadd.f32 0.0, %v1633
          %v1635 = vpop.f32.mrb[0].mxu0
          %1636 = vmatprep.mubr.bf16.mxu0 0
          %1637 = vmatmul.mubr.bf16.gmra.mrb[0].mxu0 %v1454
          %v1638 = vpop.f32.mrb[0].mxu0
          %v1639 = vadd.f32 0.0, %v1638
          %v1640 = vpop.f32.mrb[0].mxu0
          %v1641 = vpop.f32.mrb[0].mxu0
          %v1642 = vadd.f32 0.0, %v1641
          %v1643 = vpop.f32.mrb[0].mxu0
          %1644 = vmatprep.mubr.bf16.mxu0 0
          %1645 = vmatmul.mubr.bf16.gmra.mrb[0].mxu0 %v1455
          %v1646 = vpop.f32.mrb[0].mxu0
          %v1647 = vadd.f32 0.0, %v1646
          %v1648 = vpop.f32.mrb[0].mxu0
          %v1649 = vpop.f32.mrb[0].mxu0
          %v1650 = vadd.f32 0.0, %v1649
          %v1651 = vpop.f32.mrb[0].mxu0
          %1652 = vmatprep.mubr.bf16.mxu0 0
          %1653 = vmatmul.mubr.bf16.gmra.mrb[0].mxu0 %v1456
          %v1654 = vpop.f32.mrb[0].mxu0
          %v1655 = vadd.f32 0.0, %v1654
          %v1656 = vpop.f32.mrb[0].mxu0
          %v1657 = vpop.f32.mrb[0].mxu0
          %v1658 = vadd.f32 0.0, %v1657
          %v1659 = vpop.f32.mrb[0].mxu0
          %1660 = vmatprep.mubr.bf16.mxu0 0
          %1661 = vmatmul.mubr.bf16.gmra.mrb[0].mxu0 %v1457
          %v1662 = vpop.f32.mrb[0].mxu0
          %v1663 = vadd.f32 0.0, %v1662
          %v1664 = vpop.f32.mrb[0].mxu0
          %v1665 = vpop.f32.mrb[0].mxu0
          %v1666 = vadd.f32 0.0, %v1665
          %v1667 = vpop.f32.mrb[0].mxu0
          %1668 = vmatprep.mubr.bf16.mxu0 0
          %1669 = vmatmul.mubr.bf16.gmra.mrb[0].mxu0 %v1458
          %v1670 = vpop.f32.mrb[0].mxu0
          %v1671 = vadd.f32 0.0, %v1670
          %v1672 = vpop.f32.mrb[0].mxu0
          %v1673 = vpop.f32.mrb[0].mxu0
          %v1674 = vadd.f32 0.0, %v1673
          %v1675 = vpop.f32.mrb[0].mxu0
          %1676 = vmatprep.mubr.bf16.mxu0 0
          %1677 = vmatmul.mubr.bf16.gmra.mrb[0].mxu0 %v1459
          %v1678 = vpop.f32.mrb[0].mxu0
          %v1679 = vadd.f32 0.0, %v1678
          %v1680 = vpop.f32.mrb[0].mxu0
          %v1681 = vpop.f32.mrb[0].mxu0
          %v1682 = vadd.f32 0.0, %v1681
          %v1683 = vpop.f32.mrb[0].mxu0
          %1684 = vdwg.mxu0
          %v1685 = vpack.c.bf16 %v1562, %v1559
          %v1686 = vpack.c.bf16 %v1570, %v1567
          %v1687 = vpack.c.bf16 %v1578, %v1575
          %v1688 = vpack.c.bf16 %v1586, %v1583
          %v1689 = vpack.c.bf16 %v1594, %v1591
          %v1690 = vpack.c.bf16 %v1602, %v1599
          %v1691 = vpack.c.bf16 %v1610, %v1607
          %v1692 = vpack.c.bf16 %v1618, %v1615
          %v1693 = vpack.c.bf16 %v1626, %v1623
          %v1694 = vpack.c.bf16 %v1634, %v1631
          %v1695 = vpack.c.bf16 %v1642, %v1639
          %v1696 = vpack.c.bf16 %v1650, %v1647
          %v1697 = vpack.c.bf16 %v1658, %v1655
          %v1698 = vpack.c.bf16 %v1666, %v1663
          %v1699 = vpack.c.bf16 %v1674, %v1671
          %v1700 = vpack.c.bf16 %v1682, %v1679
          %s1701 = sshra.s32 %s231, 4
          %s1702 = sand.u32 %s231, 15
          %s1703 = smul.addr %s1701, 8
          %s1704 = scalar_lea.vmem [#allocation2], %s1703
          %1705 = vst [vmem:[%s1704] sm:$0xff] %v1685
          %1706 = vst [vmem:[%s1704 + $0x8] sm:$0xff] %v1686
          %1707 = vst [vmem:[%s1704 + $0x10] sm:$0xff] %v1687
          %1708 = vst [vmem:[%s1704 + $0x18] sm:$0xff] %v1688
          %1709 = vst [vmem:[%s1704 + $0x20] sm:$0xff] %v1689
          %1710 = vst [vmem:[%s1704 + $0x28] sm:$0xff] %v1690
          %1711 = vst [vmem:[%s1704 + $0x30] sm:$0xff] %v1691
          %1712 = vst [vmem:[%s1704 + $0x38] sm:$0xff] %v1692
          %1713 = vst [vmem:[%s1704 + $0x40] sm:$0xff] %v1693
          %1714 = vst [vmem:[%s1704 + $0x48] sm:$0xff] %v1694
          %1715 = vst [vmem:[%s1704 + $0x50] sm:$0xff] %v1695
          %1716 = vst [vmem:[%s1704 + $0x58] sm:$0xff] %v1696
          %1717 = vst [vmem:[%s1704 + $0x60] sm:$0xff] %v1697
          %1718 = vst [vmem:[%s1704 + $0x68] sm:$0xff] %v1698
          %1719 = vst [vmem:[%s1704 + $0x70] sm:$0xff] %v1699
          %1720 = vst [vmem:[%s1704 + $0x78] sm:$0xff] %v1700
        $region90: #{graph_encoder_forward.1} parent=85 // pred_fallthru
          _
        // Predicated region
        $region91: #{graph_encoder_forward.1} parent=85 // pred_check
          %p1721 = pneg %p232
        $region92: #{graph_encoder_forward.1} parent=85 // pred_check_branch
          %1723 = sbr.rel (%p1721) target = $region94
        $region93: #{graph_encoder_forward.1} parent=85 // pred_region
          %1724 = vst [vmem:[%s226] sm:$0xff] %v1282
          %1725 = vst [vmem:[%s226 + $0x8] sm:$0xff] %v1285
          %1726 = vst [vmem:[%s226 + $0x10] sm:$0xff] %v1290
          %1727 = vst [vmem:[%s226 + $0x18] sm:$0xff] %v1293
          %1728 = vst [vmem:[%s226 + $0x20] sm:$0xff] %v1298
          %1729 = vst [vmem:[%s226 + $0x28] sm:$0xff] %v1301
          %1730 = vst [vmem:[%s226 + $0x30] sm:$0xff] %v1306
          %1731 = vst [vmem:[%s226 + $0x38] sm:$0xff] %v1309
          %1732 = vst [vmem:[%s226 + $0x40] sm:$0xff] %v1314
          %1733 = vst [vmem:[%s226 + $0x48] sm:$0xff] %v1317
          %1734 = vst [vmem:[%s226 + $0x50] sm:$0xff] %v1322
          %1735 = vst [vmem:[%s226 + $0x58] sm:$0xff] %v1325
          %1736 = vst [vmem:[%s226 + $0x60] sm:$0xff] %v1330
          %1737 = vst [vmem:[%s226 + $0x68] sm:$0xff] %v1333
          %1738 = vst [vmem:[%s226 + $0x70] sm:$0xff] %v1338
          %1739 = vst [vmem:[%s226 + $0x78] sm:$0xff] %v1341
          %1740 = vst [vmem:[%s226 + $0x80] sm:$0xff] %v1346
          %1741 = vst [vmem:[%s226 + $0x88] sm:$0xff] %v1349
          %1742 = vst [vmem:[%s226 + $0x90] sm:$0xff] %v1354
          %1743 = vst [vmem:[%s226 + $0x98] sm:$0xff] %v1357
          %1744 = vst [vmem:[%s226 + $0xa0] sm:$0xff] %v1362
          %1745 = vst [vmem:[%s226 + $0xa8] sm:$0xff] %v1365
          %1746 = vst [vmem:[%s226 + $0xb0] sm:$0xff] %v1370
          %1747 = vst [vmem:[%s226 + $0xb8] sm:$0xff] %v1373
          %1748 = vst [vmem:[%s226 + $0xc0] sm:$0xff] %v1378
          %1749 = vst [vmem:[%s226 + $0xc8] sm:$0xff] %v1381
          %1750 = vst [vmem:[%s226 + $0xd0] sm:$0xff] %v1386
          %1751 = vst [vmem:[%s226 + $0xd8] sm:$0xff] %v1389
          %1752 = vst [vmem:[%s226 + $0xe0] sm:$0xff] %v1394
          %1753 = vst [vmem:[%s226 + $0xe8] sm:$0xff] %v1397
          %1754 = vst [vmem:[%s226 + $0xf0] sm:$0xff] %v1402
          %1755 = vst [vmem:[%s226 + $0xf8] sm:$0xff] %v1405
        $region94: #{graph_encoder_forward.1} parent=85 // pred_fallthru
          _
      $region86: #{graph_encoder_forward.1} parent=31 // pred_fallthru
        _
      %p1756 = scmp.eq.s32.totalorder %s19, 1
      %s1757 = scalar_select %p1756, %s20, 0
      %s1758 = smul.u32 32, %s1757
      %p1759 = scmp.lt.s32.totalorder %s1758, 31
      %s1760 = scalar_select %p1759, %s1758, 31
      %s1761 = smul.addr %s1760, 8
      %s1762 = scalar_lea.vmem %s4, %s1761
      // Predicated region
      $region95: #{graph_encoder_forward.1} parent=31 // pred_check
        %p1763 = pneg %p128
      $region96: #{graph_encoder_forward.1} parent=31 // pred_check_branch
        %1765 = sbr.rel (%p1763) target = $region98
      $region97: #{graph_encoder_forward.1} parent=31 // pred_region
        %p1766 = scmp.eq.s32.totalorder %s19, 1
        %s1767 = scalar_select %p1766, %s20, 0
        %s1768 = smul.u32 32, %s1767
      $region98: #{graph_encoder_forward.1} parent=31 // pred_fallthru
        _
    $region32: #{graph_encoder_forward.1} parent=5 // pred_fallthru
      _
    %p1769 = scmp.le.s32.totalorder 2, %s10
    // Predicated region
    $region99: #{graph_encoder_forward.1} parent=5 // pred_check
      %p1770 = pneg %p1769
    $region100: #{graph_encoder_forward.1} parent=5 // pred_check_branch
      %1772 = sbr.rel (%p1770) target = $region102
    $region101: #{graph_encoder_forward.1} parent=5 // pred_region
      %s1773 = ssub.s32 %s10, 2
      // Predicated region
      $region103: #{graph_encoder_forward.1} parent=101 // pred_check
        %p1774 = pneg %p134
      $region104: #{graph_encoder_forward.1} parent=101 // pred_check_branch
        %1776 = sbr.rel (%p1774) target = $region106
      $region105: #{graph_encoder_forward.1} parent=101 // pred_region
        %p1777 = scmp.eq.s32.totalorder %s21, 1
        %s1778 = scalar_select %p1777, %s22, 0
        %s1779 = smul.u32 32, %s1778
        %p1780 = scmp.lt.s32.totalorder %s1779, 31
        %s1781 = scalar_select %p1780, %s1779, 31
        %s1782 = smul.addr %s1781, 8
        %s1783 = scalar_lea.vmem %s4, %s1782
      $region106: #{graph_encoder_forward.1} parent=101 // pred_fallthru
        _
    $region102: #{graph_encoder_forward.1} parent=5 // pred_fallthru
      _
  $region6: #{graph_encoder_forward.1} parent=0 // loop_footer
    %s14 = sadd.s32 1, %s10
  $region7: #{graph_encoder_forward.1} parent=0 // loop_footer_branch
    %9 = sbr.rel target = $region3
  $region8: #{graph_encoder_forward.1} parent=0 // loop_exit
    _
  %1784 = vsyncmov [#allocation4]
  %s1785 = vpop.sfrf %1784
  %p1786 = scmp.eq.s32.totalorder %s1785, 0
  %p1787 = pneg %p1786
  %1789 = shalt.err (%p1787)

</llo_original>
